<compile_context>
chip_gen: v7x
topology: tpu7x:2x2x1
jax: 0.10.0
libtpu: 0.0.40
codegen_flags: <defaults>
</compile_context>

<pallas_src>
import functools

import jax
import jax.numpy as jnp
from jax.experimental import pallas as pl
from jax.experimental.pallas import tpu as pltpu


def _layer_norm(x, gamma, beta, eps=1e-5):
    # Matches torch.nn.LayerNorm: biased variance, eps inside rsqrt.
    mean = jnp.mean(x, axis=-1, keepdims=True)
    var = jnp.mean((x - mean) ** 2, axis=-1, keepdims=True)
    return (x - mean) * jax.lax.rsqrt(var + eps) * gamma + beta


def encoder_kernel(x_ref, wqkv_ref, wo_ref, bo_ref, ln1_ref,
                   w1_ref, b1_ref, w2_ref, b2_ref, ln2_ref,
                   o_ref, *,
                   batch_per_tile, seq, num_heads, qk_size, v_size):
    """grid = (batch_tiles, num_layers); one inner step == one encoder layer."""
    layer = pl.program_id(1)
    rows = batch_per_tile * seq
    h_dk = num_heads * qk_size
    h_dv = num_heads * v_size

    # Layer 0 of each batch tile: seed the resident carry. The f32 output
    # block (constant index across the layer axis) IS the carry buffer.
    @pl.when(layer == 0)
    def _():
        o_ref[...] = x_ref[...].astype(o_ref.dtype)

    x2d = o_ref[...]                                   # (rows, E) f32 residual
    x_bf = x2d.astype(jnp.bfloat16)

    # ---- fused Q/K/V projection: one bf16 MXU pass with M = rows.
    # 1/temperature is already folded into the Q columns of the fused weight.
    qkv = jnp.dot(x_bf, wqkv_ref[0], preferred_element_type=jnp.float32)

    # Contiguous [Q | K | V] chunks; with real dk/dv (multiples of 128) every
    # per-head slice below starts at a 128-aligned lane offset.
    q_all = qkv[:, :h_dk]
    k_all = qkv[:, h_dk:2 * h_dk]
    v_all = qkv[:, 2 * h_dk:2 * h_dk + h_dv]

    # ---- multi-head scaled-dot-product attention.
    # TODO(synk): additive attention mask not applied (mask=None path).
    # TODO(synk): for realistic S (>=1k) stream K/V tiles with an online
    # flash-style softmax instead of materializing full (B, S, S) scores.
    ctx_heads = []
    for h in range(num_heads):
        qh = q_all[:, h * qk_size:(h + 1) * qk_size].reshape(
            batch_per_tile, seq, qk_size)
        kh = k_all[:, h * qk_size:(h + 1) * qk_size].reshape(
            batch_per_tile, seq, qk_size)
        vh = v_all[:, h * v_size:(h + 1) * v_size].reshape(
            batch_per_tile, seq, v_size)

        s = jnp.einsum('bqd,bkd->bqk',
                       qh.astype(jnp.bfloat16), kh.astype(jnp.bfloat16),
                       preferred_element_type=jnp.float32)
        s = s - jnp.max(s, axis=-1, keepdims=True)
        p = jnp.exp(s)
        p = p / jnp.sum(p, axis=-1, keepdims=True)      # exact softmax
        ctx = jnp.einsum('bqk,bkd->bqd',
                         p.astype(jnp.bfloat16), vh.astype(jnp.bfloat16),
                         preferred_element_type=jnp.float32)
        ctx_heads.append(ctx.reshape(rows, v_size))

    # Head-major concat -> single fat output projection (K = H*dv).
    ctx_all = jnp.concatenate(ctx_heads, axis=-1)       # (rows, H*dv)
    attn = jnp.dot(ctx_all.astype(jnp.bfloat16), wo_ref[0],
                   preferred_element_type=jnp.float32) + bo_ref[0]

    # TODO(synk): dropout (rate=0.1) treated as identity (inference semantics).
    ln1 = ln1_ref[0]
    h1 = _layer_norm(x2d + attn, ln1[0:1], ln1[1:2])

    # ---- position-wise FFN (relu): bf16 operands, f32 accumulation.
    f = jnp.dot(h1.astype(jnp.bfloat16), w1_ref[0],
                preferred_element_type=jnp.float32) + b1_ref[0]
    f = jnp.maximum(f, 0.0)
    f = jnp.dot(f.astype(jnp.bfloat16), w2_ref[0],
                preferred_element_type=jnp.float32) + b2_ref[0]
    ln2 = ln2_ref[0]
    y = _layer_norm(h1 + f, ln2[0:1], ln2[1:2])

    o_ref[...] = y.astype(o_ref.dtype)                  # carry / final output


def stack_layer_params(layer_params, *, temperature):
    """Stack per-layer params on a leading layer dim; fuse Q/K/V, fold 1/temp,
    cast the big streamed matrices to bf16 (biases / LN params stay f32)."""
    inv_temp = 1.0 / temperature
    cols = {k: [] for k in
            ("w_qkv", "w_o", "b_o", "ln1", "w1", "b1", "w2", "b2", "ln2")}
    for p in layer_params:
        cols["w_qkv"].append(
            jnp.concatenate([p["wq"] * inv_temp, p["wk"], p["wv"]], axis=-1))
        cols["w_o"].append(p["wo"])
        cols["b_o"].append(p["bo"])
        cols["ln1"].append(jnp.concatenate([p["ln1_g"], p["ln1_b"]], axis=0))
        cols["w1"].append(p["w1"])
        cols["b1"].append(p["b1"])
        cols["w2"].append(p["w2"])
        cols["b2"].append(p["b2"])
        cols["ln2"].append(jnp.concatenate([p["ln2_g"], p["ln2_b"]], axis=0))
    stacked = {k: jnp.stack(v, axis=0) for k, v in cols.items()}
    for k in ("w_qkv", "w_o", "w1", "w2"):              # bf16 weight streaming
        stacked[k] = stacked[k].astype(jnp.bfloat16)
    return stacked


def encoder_forward(x, stacked, *, num_heads, qk_size, v_size,
                    batch_tiles=None):
    B, S, E = x.shape
    L, _, n_qkv = stacked["w_qkv"].shape
    h_dv = stacked["w_o"].shape[1]
    F = stacked["w1"].shape[2]
    rows = B * S

    # Split the batch across a "parallel" grid axis so v7x's two TensorCores
    # both get work; the layer axis stays innermost/"arbitrary" so the
    # resident output/carry block is never written back mid-stack.
    if batch_tiles is None:
        batch_tiles = 2 if B % 2 == 0 else 1
    assert B % batch_tiles == 0
    b_per_tile = B // batch_tiles
    rows_tile = b_per_tile * S

    kernel = functools.partial(
        encoder_kernel, batch_per_tile=b_per_tile, seq=S,
        num_heads=num_heads, qk_size=qk_size, v_size=v_size)

    def per_layer(shape):
        n = len(shape)
        return pl.BlockSpec((1,) + shape, lambda b, l, n=n: (l,) + (0,) * n)

    # Reshape (B,S,E)->(B*S,E) outside the kernel: free in XLA, gives every
    # matmul a fat M dimension. (For real configs keep E, F multiples of 128.)
    x2d = x.reshape(rows, E)

    # Explicit VMEM budget: resident row tiles + double-buffered bf16 weights
    # for one layer, generous slack; clamped well below v7x's 64 MiB/TC.
    # TODO(synk): at real E/F sizes, single-buffer or K-tile W1/W2 for v7x.
    layer_w_bytes = 2 * (E * n_qkv + h_dv * E + E * F + F * E)   # bf16
    estimate = 4 * rows_tile * E * 4 + 2 * layer_w_bytes + (4 << 20)
    vmem_limit = int(min(96 * 2 ** 20, max(16 * 2 ** 20, estimate)))

    out2d = pl.pallas_call(
        kernel,
        out_shape=jax.ShapeDtypeStruct((rows, E), jnp.float32),
        grid=(batch_tiles, L),
        in_specs=[
            pl.BlockSpec((rows_tile, E), lambda b, l: (b, 0)),   # activations
            per_layer((E, n_qkv)),                               # fused W_qkv
            per_layer((h_dv, E)),                                # W_o
            per_layer((1, E)),                                   # b_o
            per_layer((2, E)),                                   # ln1 gamma/beta
            per_layer((E, F)),                                   # W_1
            per_layer((1, F)),                                   # b_1
            per_layer((F, E)),                                   # W_2
            per_layer((1, E)),                                   # b_2
            per_layer((2, E)),                                   # ln2 gamma/beta
        ],
        out_specs=pl.BlockSpec((rows_tile, E), lambda b, l: (b, 0)),
        compiler_params=pltpu.CompilerParams(
            dimension_semantics=("parallel", "arbitrary"),
            vmem_limit_bytes=vmem_limit),
    )(x2d, stacked["w_qkv"], stacked["w_o"], stacked["b_o"], stacked["ln1"],
      stacked["w1"], stacked["b1"], stacked["w2"], stacked["b2"],
      stacked["ln2"])

    return out2d.reshape(B, S, E).astype(x.dtype)


def init_encoder_params(key, num_layers, embedding_size, query_key_size,
                        value_size, num_heads, ffn_hidden_dim):
    E, dk, dv, H, F = (embedding_size, query_key_size, value_size,
                       num_heads, ffn_hidden_dim)
    params = []
    for _ in range(num_layers):
        key, *ks = jax.random.split(key, 7)
        scale = 0.02
        params.append(dict(
            wq=scale * jax.random.normal(ks[0], (E, H * dk), jnp.float32),
            wk=scale * jax.random.normal(ks[1], (E, H * dk), jnp.float32),
            wv=scale * jax.random.normal(ks[2], (E, H * dv), jnp.float32),
            wo=scale * jax.random.normal(ks[3], (H * dv, E), jnp.float32),
            bo=jnp.zeros((1, E), jnp.float32),
            ln1_g=jnp.ones((1, E), jnp.float32),
            ln1_b=jnp.zeros((1, E), jnp.float32),
            w1=scale * jax.random.normal(ks[4], (E, F), jnp.float32),
            b1=jnp.zeros((1, F), jnp.float32),
            w2=scale * jax.random.normal(ks[5], (F, E), jnp.float32),
            b2=jnp.zeros((1, E), jnp.float32),
            ln2_g=jnp.ones((1, E), jnp.float32),
            ln2_b=jnp.zeros((1, E), jnp.float32),
        ))
    return params


if __name__ == "__main__":
    # Small config consistent with the module's constructor.
    num_layers = 2
    embedding_size = 32
    query_key_size = 8      # per-head
    value_size = 8          # per-head
    num_heads = 4
    ffn_hidden_dim = 64
    temperature = None      # default -> sqrt(query_key_size)

    B, S = 2, 8
    temp = float(query_key_size) ** 0.5 if temperature is None else temperature

    key = jax.random.PRNGKey(0)
    key, xk = jax.random.split(key)
    x = jax.random.normal(xk, (B, S, embedding_size), jnp.float32)

    layer_params = init_encoder_params(
        key, num_layers, embedding_size, query_key_size, value_size,
        num_heads, ffn_hidden_dim)
    stacked = stack_layer_params(layer_params, temperature=temp)

    out = encoder_forward(x, stacked, num_heads=num_heads,
                          qk_size=query_key_size, v_size=value_size)
    jax.block_until_ready(out)
    assert out.shape == (B, S, embedding_size), out.shape
    print("KERNEL_OK")
</pallas_src>

<mosaic_0001>
module attributes {stable_mosaic.version = 11 : i64} {
  func.func @encoder_kernel(%arg0: i32, %arg1: i32, %arg2: memref<8x32xf32, #tpu.memory_space<vmem>>, %arg3: memref<1x32x96xbf16, #tpu.memory_space<vmem>>, %arg4: memref<1x32x32xbf16, #tpu.memory_space<vmem>>, %arg5: memref<1x1x32xf32, #tpu.memory_space<vmem>>, %arg6: memref<1x2x32xf32, #tpu.memory_space<vmem>>, %arg7: memref<1x32x64xbf16, #tpu.memory_space<vmem>>, %arg8: memref<1x1x64xf32, #tpu.memory_space<vmem>>, %arg9: memref<1x64x32xbf16, #tpu.memory_space<vmem>>, %arg10: memref<1x1x32xf32, #tpu.memory_space<vmem>>, %arg11: memref<1x2x32xf32, #tpu.memory_space<vmem>>, %arg12: memref<8x32xf32, #tpu.memory_space<vmem>>) attributes {dimension_semantics = [#tpu.dimension_semantics<parallel>, #tpu.dimension_semantics<arbitrary>], iteration_bounds = array<i64: 2, 2>, scalar_prefetch = 0 : i64, scratch_operands = 0 : i64, tpu.core_type = #tpu.core_type<tc>, window_params = [{transform_indices = @transform_0, window_bounds = array<i64: 8, 32>}, {transform_indices = @transform_1, window_bounds = array<i64: 1, 32, 96>}, {transform_indices = @transform_2, window_bounds = array<i64: 1, 32, 32>}, {transform_indices = @transform_3, window_bounds = array<i64: 1, 1, 32>}, {transform_indices = @transform_4, window_bounds = array<i64: 1, 2, 32>}, {transform_indices = @transform_5, window_bounds = array<i64: 1, 32, 64>}, {transform_indices = @transform_6, window_bounds = array<i64: 1, 1, 64>}, {transform_indices = @transform_7, window_bounds = array<i64: 1, 64, 32>}, {transform_indices = @transform_8, window_bounds = array<i64: 1, 1, 32>}, {transform_indices = @transform_9, window_bounds = array<i64: 1, 2, 32>}, {transform_indices = @transform_10, window_bounds = array<i64: 8, 32>}]} {
    %c0_i32 = arith.constant 0 : i32
    %0 = arith.cmpi eq, %arg1, %c0_i32 : i32
    %1 = arith.extui %0 : i1 to i32
    %c0_i32_0 = arith.constant 0 : i32
    %2 = arith.cmpi ne, %1, %c0_i32_0 : i32
    scf.if %2 {
      %c0_61 = arith.constant 0 : index
      %c0_62 = arith.constant 0 : index
      %181 = vector.load %arg2[%c0_61, %c0_62] : memref<8x32xf32, #tpu.memory_space<vmem>>, vector<8x32xf32>
      %c0_63 = arith.constant 0 : index
      %c0_64 = arith.constant 0 : index
      %182 = vector.load %arg12[%c0_63, %c0_64] : memref<8x32xf32, #tpu.memory_space<vmem>>, vector<8x32xf32>
      tpu.vector_store %arg12[%c0_63, %c0_64], %181 {strides = array<i32>} : memref<8x32xf32, #tpu.memory_space<vmem>>, vector<8x32xf32>,
    } else {
    }
    %c0 = arith.constant 0 : index
    %c0_1 = arith.constant 0 : index
    %3 = vector.load %arg12[%c0, %c0_1] : memref<8x32xf32, #tpu.memory_space<vmem>>, vector<8x32xf32>
    %4 = arith.truncf %3 : vector<8x32xf32> to vector<8x32xbf16>
    %c0_2 = arith.constant 0 : index
    %c0_3 = arith.constant 0 : index
    %c0_4 = arith.constant 0 : index
    %5 = vector.load %arg3[%c0_2, %c0_3, %c0_4] : memref<1x32x96xbf16, #tpu.memory_space<vmem>>, vector<1x32x96xbf16>
    %6 = vector.shape_cast %5 : vector<1x32x96xbf16> to vector<32x96xbf16>
    %cst = arith.constant dense<0.000000e+00> : vector<8x96xf32>
    %7 = tpu.matmul %4, %6, %cst {dimension_numbers = #tpu.dot_dimension_numbers<[1], [0], [0], [1], [0, 0, 1, 1], [], []>} : vector<8x32xbf16>, vector<32x96xbf16>, vector<8x96xf32> -> vector<8x96xf32>
    %8 = vector.extract_strided_slice %7 {offsets = [0, 0], sizes = [8, 32], strides = [1, 1]} : vector<8x96xf32> to vector<8x32xf32>
    %9 = vector.extract_strided_slice %7 {offsets = [0, 32], sizes = [8, 32], strides = [1, 1]} : vector<8x96xf32> to vector<8x32xf32>
    %10 = vector.extract_strided_slice %7 {offsets = [0, 64], sizes = [8, 32], strides = [1, 1]} : vector<8x96xf32> to vector<8x32xf32>
    %11 = vector.extract_strided_slice %8 {offsets = [0, 0], sizes = [8, 8], strides = [1, 1]} : vector<8x32xf32> to vector<8x8xf32>
    %12 = vector.shape_cast %11 : vector<8x8xf32> to vector<1x8x8xf32>
    %13 = vector.extract_strided_slice %9 {offsets = [0, 0], sizes = [8, 8], strides = [1, 1]} : vector<8x32xf32> to vector<8x8xf32>
    %14 = vector.shape_cast %13 : vector<8x8xf32> to vector<1x8x8xf32>
    %15 = vector.extract_strided_slice %10 {offsets = [0, 0], sizes = [8, 8], strides = [1, 1]} : vector<8x32xf32> to vector<8x8xf32>
    %16 = vector.shape_cast %15 : vector<8x8xf32> to vector<1x8x8xf32>
    %17 = arith.truncf %12 : vector<1x8x8xf32> to vector<1x8x8xbf16>
    %18 = arith.truncf %14 : vector<1x8x8xf32> to vector<1x8x8xbf16>
    "tpu.trace_start"() <{level = 10 : i32, message = "bqd,bkd->bqk"}> : () -> ()
    %cst_5 = arith.constant dense<0.000000e+00> : vector<1x8x8xf32>
    %19 = tpu.matmul %17, %18, %cst_5 {dimension_numbers = #tpu.dot_dimension_numbers<[2], [2], [1], [1], [0, 0, 0, 1, 1, 1], [0], [0]>} : vector<1x8x8xbf16>, vector<1x8x8xbf16>, vector<1x8x8xf32> -> vector<1x8x8xf32>
    "tpu.trace_stop"() : () -> ()
    %cst_6 = arith.constant dense<0xFF800000> : vector<1x8xf32>
    %20 = vector.multi_reduction <maximumf>, %19, %cst_6 [2] : vector<1x8x8xf32> to vector<1x8xf32>
    %21 = vector.shape_cast %20 : vector<1x8xf32> to vector<1x8x1xf32>
    %22 = vector.broadcast %21 : vector<1x8x1xf32> to vector<1x8x8xf32>
    %23 = arith.subf %19, %22 : vector<1x8x8xf32>
    %24 = math.exp %23 : vector<1x8x8xf32>
    %cst_7 = arith.constant dense<0.000000e+00> : vector<1x8xf32>
    %25 = vector.multi_reduction <add>, %24, %cst_7 [2] : vector<1x8x8xf32> to vector<1x8xf32>
    %26 = vector.shape_cast %25 : vector<1x8xf32> to vector<1x8x1xf32>
    %27 = vector.broadcast %26 : vector<1x8x1xf32> to vector<1x8x8xf32>
    %28 = arith.divf %24, %27 : vector<1x8x8xf32>
    %29 = arith.truncf %28 : vector<1x8x8xf32> to vector<1x8x8xbf16>
    %30 = arith.truncf %16 : vector<1x8x8xf32> to vector<1x8x8xbf16>
    "tpu.trace_start"() <{level = 10 : i32, message = "bqk,bkd->bqd"}> : () -> ()
    %cst_8 = arith.constant dense<0.000000e+00> : vector<1x8x8xf32>
    %31 = tpu.matmul %29, %30, %cst_8 {dimension_numbers = #tpu.dot_dimension_numbers<[2], [1], [1], [2], [0, 0, 0, 1, 1, 2], [0], [0]>} : vector<1x8x8xbf16>, vector<1x8x8xbf16>, vector<1x8x8xf32> -> vector<1x8x8xf32>
    "tpu.trace_stop"() : () -> ()
    %32 = vector.shape_cast %31 : vector<1x8x8xf32> to vector<8x8xf32>
    %33 = vector.extract_strided_slice %8 {offsets = [0, 8], sizes = [8, 8], strides = [1, 1]} : vector<8x32xf32> to vector<8x8xf32>
    %34 = vector.shape_cast %33 : vector<8x8xf32> to vector<1x8x8xf32>
    %35 = vector.extract_strided_slice %9 {offsets = [0, 8], sizes = [8, 8], strides = [1, 1]} : vector<8x32xf32> to vector<8x8xf32>
    %36 = vector.shape_cast %35 : vector<8x8xf32> to vector<1x8x8xf32>
    %37 = vector.extract_strided_slice %10 {offsets = [0, 8], sizes = [8, 8], strides = [1, 1]} : vector<8x32xf32> to vector<8x8xf32>
    %38 = vector.shape_cast %37 : vector<8x8xf32> to vector<1x8x8xf32>
    %39 = arith.truncf %34 : vector<1x8x8xf32> to vector<1x8x8xbf16>
    %40 = arith.truncf %36 : vector<1x8x8xf32> to vector<1x8x8xbf16>
    "tpu.trace_start"() <{level = 10 : i32, message = "bqd,bkd->bqk"}> : () -> ()
    %cst_9 = arith.constant dense<0.000000e+00> : vector<1x8x8xf32>
    %41 = tpu.matmul %39, %40, %cst_9 {dimension_numbers = #tpu.dot_dimension_numbers<[2], [2], [1], [1], [0, 0, 0, 1, 1, 1], [0], [0]>} : vector<1x8x8xbf16>, vector<1x8x8xbf16>, vector<1x8x8xf32> -> vector<1x8x8xf32>
    "tpu.trace_stop"() : () -> ()
    %cst_10 = arith.constant dense<0xFF800000> : vector<1x8xf32>
    %42 = vector.multi_reduction <maximumf>, %41, %cst_10 [2] : vector<1x8x8xf32> to vector<1x8xf32>
    %43 = vector.shape_cast %42 : vector<1x8xf32> to vector<1x8x1xf32>
    %44 = vector.broadcast %43 : vector<1x8x1xf32> to vector<1x8x8xf32>
    %45 = arith.subf %41, %44 : vector<1x8x8xf32>
    %46 = math.exp %45 : vector<1x8x8xf32>
    %cst_11 = arith.constant dense<0.000000e+00> : vector<1x8xf32>
    %47 = vector.multi_reduction <add>, %46, %cst_11 [2] : vector<1x8x8xf32> to vector<1x8xf32>
    %48 = vector.shape_cast %47 : vector<1x8xf32> to vector<1x8x1xf32>
    %49 = vector.broadcast %48 : vector<1x8x1xf32> to vector<1x8x8xf32>
    %50 = arith.divf %46, %49 : vector<1x8x8xf32>
    %51 = arith.truncf %50 : vector<1x8x8xf32> to vector<1x8x8xbf16>
    %52 = arith.truncf %38 : vector<1x8x8xf32> to vector<1x8x8xbf16>
    "tpu.trace_start"() <{level = 10 : i32, message = "bqk,bkd->bqd"}> : () -> ()
    %cst_12 = arith.constant dense<0.000000e+00> : vector<1x8x8xf32>
    %53 = tpu.matmul %51, %52, %cst_12 {dimension_numbers = #tpu.dot_dimension_numbers<[2], [1], [1], [2], [0, 0, 0, 1, 1, 2], [0], [0]>} : vector<1x8x8xbf16>, vector<1x8x8xbf16>, vector<1x8x8xf32> -> vector<1x8x8xf32>
    "tpu.trace_stop"() : () -> ()
    %54 = vector.shape_cast %53 : vector<1x8x8xf32> to vector<8x8xf32>
    %55 = vector.extract_strided_slice %8 {offsets = [0, 16], sizes = [8, 8], strides = [1, 1]} : vector<8x32xf32> to vector<8x8xf32>
    %56 = vector.shape_cast %55 : vector<8x8xf32> to vector<1x8x8xf32>
    %57 = vector.extract_strided_slice %9 {offsets = [0, 16], sizes = [8, 8], strides = [1, 1]} : vector<8x32xf32> to vector<8x8xf32>
    %58 = vector.shape_cast %57 : vector<8x8xf32> to vector<1x8x8xf32>
    %59 = vector.extract_strided_slice %10 {offsets = [0, 16], sizes = [8, 8], strides = [1, 1]} : vector<8x32xf32> to vector<8x8xf32>
    %60 = vector.shape_cast %59 : vector<8x8xf32> to vector<1x8x8xf32>
    %61 = arith.truncf %56 : vector<1x8x8xf32> to vector<1x8x8xbf16>
    %62 = arith.truncf %58 : vector<1x8x8xf32> to vector<1x8x8xbf16>
    "tpu.trace_start"() <{level = 10 : i32, message = "bqd,bkd->bqk"}> : () -> ()
    %cst_13 = arith.constant dense<0.000000e+00> : vector<1x8x8xf32>
    %63 = tpu.matmul %61, %62, %cst_13 {dimension_numbers = #tpu.dot_dimension_numbers<[2], [2], [1], [1], [0, 0, 0, 1, 1, 1], [0], [0]>} : vector<1x8x8xbf16>, vector<1x8x8xbf16>, vector<1x8x8xf32> -> vector<1x8x8xf32>
    "tpu.trace_stop"() : () -> ()
    %cst_14 = arith.constant dense<0xFF800000> : vector<1x8xf32>
    %64 = vector.multi_reduction <maximumf>, %63, %cst_14 [2] : vector<1x8x8xf32> to vector<1x8xf32>
    %65 = vector.shape_cast %64 : vector<1x8xf32> to vector<1x8x1xf32>
    %66 = vector.broadcast %65 : vector<1x8x1xf32> to vector<1x8x8xf32>
    %67 = arith.subf %63, %66 : vector<1x8x8xf32>
    %68 = math.exp %67 : vector<1x8x8xf32>
    %cst_15 = arith.constant dense<0.000000e+00> : vector<1x8xf32>
    %69 = vector.multi_reduction <add>, %68, %cst_15 [2] : vector<1x8x8xf32> to vector<1x8xf32>
    %70 = vector.shape_cast %69 : vector<1x8xf32> to vector<1x8x1xf32>
    %71 = vector.broadcast %70 : vector<1x8x1xf32> to vector<1x8x8xf32>
    %72 = arith.divf %68, %71 : vector<1x8x8xf32>
    %73 = arith.truncf %72 : vector<1x8x8xf32> to vector<1x8x8xbf16>
    %74 = arith.truncf %60 : vector<1x8x8xf32> to vector<1x8x8xbf16>
    "tpu.trace_start"() <{level = 10 : i32, message = "bqk,bkd->bqd"}> : () -> ()
    %cst_16 = arith.constant dense<0.000000e+00> : vector<1x8x8xf32>
    %75 = tpu.matmul %73, %74, %cst_16 {dimension_numbers = #tpu.dot_dimension_numbers<[2], [1], [1], [2], [0, 0, 0, 1, 1, 2], [0], [0]>} : vector<1x8x8xbf16>, vector<1x8x8xbf16>, vector<1x8x8xf32> -> vector<1x8x8xf32>
    "tpu.trace_stop"() : () -> ()
    %76 = vector.shape_cast %75 : vector<1x8x8xf32> to vector<8x8xf32>
    %77 = vector.extract_strided_slice %8 {offsets = [0, 24], sizes = [8, 8], strides = [1, 1]} : vector<8x32xf32> to vector<8x8xf32>
    %78 = vector.shape_cast %77 : vector<8x8xf32> to vector<1x8x8xf32>
    %79 = vector.extract_strided_slice %9 {offsets = [0, 24], sizes = [8, 8], strides = [1, 1]} : vector<8x32xf32> to vector<8x8xf32>
    %80 = vector.shape_cast %79 : vector<8x8xf32> to vector<1x8x8xf32>
    %81 = vector.extract_strided_slice %10 {offsets = [0, 24], sizes = [8, 8], strides = [1, 1]} : vector<8x32xf32> to vector<8x8xf32>
    %82 = vector.shape_cast %81 : vector<8x8xf32> to vector<1x8x8xf32>
    %83 = arith.truncf %78 : vector<1x8x8xf32> to vector<1x8x8xbf16>
    %84 = arith.truncf %80 : vector<1x8x8xf32> to vector<1x8x8xbf16>
    "tpu.trace_start"() <{level = 10 : i32, message = "bqd,bkd->bqk"}> : () -> ()
    %cst_17 = arith.constant dense<0.000000e+00> : vector<1x8x8xf32>
    %85 = tpu.matmul %83, %84, %cst_17 {dimension_numbers = #tpu.dot_dimension_numbers<[2], [2], [1], [1], [0, 0, 0, 1, 1, 1], [0], [0]>} : vector<1x8x8xbf16>, vector<1x8x8xbf16>, vector<1x8x8xf32> -> vector<1x8x8xf32>
    "tpu.trace_stop"() : () -> ()
    %cst_18 = arith.constant dense<0xFF800000> : vector<1x8xf32>
    %86 = vector.multi_reduction <maximumf>, %85, %cst_18 [2] : vector<1x8x8xf32> to vector<1x8xf32>
    %87 = vector.shape_cast %86 : vector<1x8xf32> to vector<1x8x1xf32>
    %88 = vector.broadcast %87 : vector<1x8x1xf32> to vector<1x8x8xf32>
    %89 = arith.subf %85, %88 : vector<1x8x8xf32>
    %90 = math.exp %89 : vector<1x8x8xf32>
    %cst_19 = arith.constant dense<0.000000e+00> : vector<1x8xf32>
    %91 = vector.multi_reduction <add>, %90, %cst_19 [2] : vector<1x8x8xf32> to vector<1x8xf32>
    %92 = vector.shape_cast %91 : vector<1x8xf32> to vector<1x8x1xf32>
    %93 = vector.broadcast %92 : vector<1x8x1xf32> to vector<1x8x8xf32>
    %94 = arith.divf %90, %93 : vector<1x8x8xf32>
    %95 = arith.truncf %94 : vector<1x8x8xf32> to vector<1x8x8xbf16>
    %96 = arith.truncf %82 : vector<1x8x8xf32> to vector<1x8x8xbf16>
    "tpu.trace_start"() <{level = 10 : i32, message = "bqk,bkd->bqd"}> : () -> ()
    %cst_20 = arith.constant dense<0.000000e+00> : vector<1x8x8xf32>
    %97 = tpu.matmul %95, %96, %cst_20 {dimension_numbers = #tpu.dot_dimension_numbers<[2], [1], [1], [2], [0, 0, 0, 1, 1, 2], [0], [0]>} : vector<1x8x8xbf16>, vector<1x8x8xbf16>, vector<1x8x8xf32> -> vector<1x8x8xf32>
    "tpu.trace_stop"() : () -> ()
    %98 = vector.shape_cast %97 : vector<1x8x8xf32> to vector<8x8xf32>
    %99 = tpu.concatenate %32, %54, %76, %98 in 1 : vector<8x8xf32>, vector<8x8xf32>, vector<8x8xf32>, vector<8x8xf32> -> vector<8x32xf32>
    %100 = arith.truncf %99 : vector<8x32xf32> to vector<8x32xbf16>
    %c0_21 = arith.constant 0 : index
    %c0_22 = arith.constant 0 : index
    %c0_23 = arith.constant 0 : index
    %101 = vector.load %arg4[%c0_21, %c0_22, %c0_23] : memref<1x32x32xbf16, #tpu.memory_space<vmem>>, vector<1x32x32xbf16>
    %102 = vector.shape_cast %101 : vector<1x32x32xbf16> to vector<32x32xbf16>
    %cst_24 = arith.constant dense<0.000000e+00> : vector<8x32xf32>
    %103 = tpu.matmul %100, %102, %cst_24 {dimension_numbers = #tpu.dot_dimension_numbers<[1], [0], [0], [1], [0, 0, 1, 1], [], []>} : vector<8x32xbf16>, vector<32x32xbf16>, vector<8x32xf32> -> vector<8x32xf32>
    %c0_25 = arith.constant 0 : index
    %c0_26 = arith.constant 0 : index
    %c0_27 = arith.constant 0 : index
    %104 = vector.load %arg5[%c0_25, %c0_26, %c0_27] : memref<1x1x32xf32, #tpu.memory_space<vmem>>, vector<1x1x32xf32>
    %105 = vector.shape_cast %104 : vector<1x1x32xf32> to vector<1x32xf32>
    %106 = vector.broadcast %105 : vector<1x32xf32> to vector<8x32xf32>
    %107 = arith.addf %103, %106 : vector<8x32xf32>
    %c0_28 = arith.constant 0 : index
    %c0_29 = arith.constant 0 : index
    %c0_30 = arith.constant 0 : index
    %108 = vector.load %arg6[%c0_28, %c0_29, %c0_30] : memref<1x2x32xf32, #tpu.memory_space<vmem>>, vector<1x2x32xf32>
    %109 = vector.shape_cast %108 : vector<1x2x32xf32> to vector<2x32xf32>
    %110 = arith.addf %3, %107 : vector<8x32xf32>
    %111 = vector.extract_strided_slice %109 {offsets = [0, 0], sizes = [1, 32], strides = [1, 1]} : vector<2x32xf32> to vector<1x32xf32>
    %112 = vector.extract_strided_slice %109 {offsets = [1, 0], sizes = [1, 32], strides = [1, 1]} : vector<2x32xf32> to vector<1x32xf32>
    %cst_31 = arith.constant dense<0.000000e+00> : vector<8xf32>
    %113 = vector.multi_reduction <add>, %110, %cst_31 [1] : vector<8x32xf32> to vector<8xf32>
    %114 = vector.shape_cast %113 : vector<8xf32> to vector<8x1xf32>
    %cst_32 = arith.constant 3.200000e+01 : f32
    %115 = vector.broadcast %cst_32 : f32 to vector<8x1xf32>
    %116 = arith.divf %114, %115 : vector<8x1xf32>
    %117 = vector.broadcast %116 : vector<8x1xf32> to vector<8x32xf32>
    %118 = arith.subf %110, %117 : vector<8x32xf32>
    %119 = arith.mulf %118, %118 : vector<8x32xf32>
    %cst_33 = arith.constant dense<0.000000e+00> : vector<8xf32>
    %120 = vector.multi_reduction <add>, %119, %cst_33 [1] : vector<8x32xf32> to vector<8xf32>
    %121 = vector.shape_cast %120 : vector<8xf32> to vector<8x1xf32>
    %cst_34 = arith.constant 3.200000e+01 : f32
    %122 = vector.broadcast %cst_34 : f32 to vector<8x1xf32>
    %123 = arith.divf %121, %122 : vector<8x1xf32>
    %124 = vector.broadcast %116 : vector<8x1xf32> to vector<8x32xf32>
    %125 = arith.subf %110, %124 : vector<8x32xf32>
    %cst_35 = arith.constant 9.99999974E-6 : f32
    %126 = vector.broadcast %cst_35 : f32 to vector<8x1xf32>
    %127 = arith.addf %123, %126 : vector<8x1xf32>
    %128 = math.rsqrt %127 : vector<8x1xf32>
    %129 = vector.broadcast %128 : vector<8x1xf32> to vector<8x32xf32>
    %130 = arith.mulf %125, %129 : vector<8x32xf32>
    %131 = vector.broadcast %111 : vector<1x32xf32> to vector<8x32xf32>
    %132 = arith.mulf %130, %131 : vector<8x32xf32>
    %133 = vector.broadcast %112 : vector<1x32xf32> to vector<8x32xf32>
    %134 = arith.addf %132, %133 : vector<8x32xf32>
    %135 = arith.truncf %134 : vector<8x32xf32> to vector<8x32xbf16>
    %c0_36 = arith.constant 0 : index
    %c0_37 = arith.constant 0 : index
    %c0_38 = arith.constant 0 : index
    %136 = vector.load %arg7[%c0_36, %c0_37, %c0_38] : memref<1x32x64xbf16, #tpu.memory_space<vmem>>, vector<1x32x64xbf16>
    %137 = vector.shape_cast %136 : vector<1x32x64xbf16> to vector<32x64xbf16>
    %cst_39 = arith.constant dense<0.000000e+00> : vector<8x64xf32>
    %138 = tpu.matmul %135, %137, %cst_39 {dimension_numbers = #tpu.dot_dimension_numbers<[1], [0], [0], [1], [0, 0, 1, 1], [], []>} : vector<8x32xbf16>, vector<32x64xbf16>, vector<8x64xf32> -> vector<8x64xf32>
    %c0_40 = arith.constant 0 : index
    %c0_41 = arith.constant 0 : index
    %c0_42 = arith.constant 0 : index
    %139 = vector.load %arg8[%c0_40, %c0_41, %c0_42] : memref<1x1x64xf32, #tpu.memory_space<vmem>>, vector<1x1x64xf32>
    %140 = vector.shape_cast %139 : vector<1x1x64xf32> to vector<1x64xf32>
    %141 = vector.broadcast %140 : vector<1x64xf32> to vector<8x64xf32>
    %142 = arith.addf %138, %141 : vector<8x64xf32>
    %cst_43 = arith.constant 0.000000e+00 : f32
    %143 = vector.broadcast %cst_43 : f32 to vector<8x64xf32>
    %144 = arith.maximumf %142, %143 : vector<8x64xf32>
    %145 = arith.truncf %144 : vector<8x64xf32> to vector<8x64xbf16>
    %c0_44 = arith.constant 0 : index
    %c0_45 = arith.constant 0 : index
    %c0_46 = arith.constant 0 : index
    %146 = vector.load %arg9[%c0_44, %c0_45, %c0_46] : memref<1x64x32xbf16, #tpu.memory_space<vmem>>, vector<1x64x32xbf16>
    %147 = vector.shape_cast %146 : vector<1x64x32xbf16> to vector<64x32xbf16>
    %cst_47 = arith.constant dense<0.000000e+00> : vector<8x32xf32>
    %148 = tpu.matmul %145, %147, %cst_47 {dimension_numbers = #tpu.dot_dimension_numbers<[1], [0], [0], [1], [0, 0, 1, 1], [], []>} : vector<8x64xbf16>, vector<64x32xbf16>, vector<8x32xf32> -> vector<8x32xf32>
    %c0_48 = arith.constant 0 : index
    %c0_49 = arith.constant 0 : index
    %c0_50 = arith.constant 0 : index
    %149 = vector.load %arg10[%c0_48, %c0_49, %c0_50] : memref<1x1x32xf32, #tpu.memory_space<vmem>>, vector<1x1x32xf32>
    %150 = vector.shape_cast %149 : vector<1x1x32xf32> to vector<1x32xf32>
    %151 = vector.broadcast %150 : vector<1x32xf32> to vector<8x32xf32>
    %152 = arith.addf %148, %151 : vector<8x32xf32>
    %c0_51 = arith.constant 0 : index
    %c0_52 = arith.constant 0 : index
    %c0_53 = arith.constant 0 : index
    %153 = vector.load %arg11[%c0_51, %c0_52, %c0_53] : memref<1x2x32xf32, #tpu.memory_space<vmem>>, vector<1x2x32xf32>
    %154 = vector.shape_cast %153 : vector<1x2x32xf32> to vector<2x32xf32>
    %155 = arith.addf %134, %152 : vector<8x32xf32>
    %156 = vector.extract_strided_slice %154 {offsets = [0, 0], sizes = [1, 32], strides = [1, 1]} : vector<2x32xf32> to vector<1x32xf32>
    %157 = vector.extract_strided_slice %154 {offsets = [1, 0], sizes = [1, 32], strides = [1, 1]} : vector<2x32xf32> to vector<1x32xf32>
    %cst_54 = arith.constant dense<0.000000e+00> : vector<8xf32>
    %158 = vector.multi_reduction <add>, %155, %cst_54 [1] : vector<8x32xf32> to vector<8xf32>
    %159 = vector.shape_cast %158 : vector<8xf32> to vector<8x1xf32>
    %cst_55 = arith.constant 3.200000e+01 : f32
    %160 = vector.broadcast %cst_55 : f32 to vector<8x1xf32>
    %161 = arith.divf %159, %160 : vector<8x1xf32>
    %162 = vector.broadcast %161 : vector<8x1xf32> to vector<8x32xf32>
    %163 = arith.subf %155, %162 : vector<8x32xf32>
    %164 = arith.mulf %163, %163 : vector<8x32xf32>
    %cst_56 = arith.constant dense<0.000000e+00> : vector<8xf32>
    %165 = vector.multi_reduction <add>, %164, %cst_56 [1] : vector<8x32xf32> to vector<8xf32>
    %166 = vector.shape_cast %165 : vector<8xf32> to vector<8x1xf32>
    %cst_57 = arith.constant 3.200000e+01 : f32
    %167 = vector.broadcast %cst_57 : f32 to vector<8x1xf32>
    %168 = arith.divf %166, %167 : vector<8x1xf32>
    %169 = vector.broadcast %161 : vector<8x1xf32> to vector<8x32xf32>
    %170 = arith.subf %155, %169 : vector<8x32xf32>
    %cst_58 = arith.constant 9.99999974E-6 : f32
    %171 = vector.broadcast %cst_58 : f32 to vector<8x1xf32>
    %172 = arith.addf %168, %171 : vector<8x1xf32>
    %173 = math.rsqrt %172 : vector<8x1xf32>
    %174 = vector.broadcast %173 : vector<8x1xf32> to vector<8x32xf32>
    %175 = arith.mulf %170, %174 : vector<8x32xf32>
    %176 = vector.broadcast %156 : vector<1x32xf32> to vector<8x32xf32>
    %177 = arith.mulf %175, %176 : vector<8x32xf32>
    %178 = vector.broadcast %157 : vector<1x32xf32> to vector<8x32xf32>
    %179 = arith.addf %177, %178 : vector<8x32xf32>
    %c0_59 = arith.constant 0 : index
    %c0_60 = arith.constant 0 : index
    %180 = vector.load %arg12[%c0_59, %c0_60] : memref<8x32xf32, #tpu.memory_space<vmem>>, vector<8x32xf32>
    tpu.vector_store %arg12[%c0_59, %c0_60], %179 {strides = array<i32>} : memref<8x32xf32, #tpu.memory_space<vmem>>, vector<8x32xf32>,
    return
  }
  func.func @transform_0(%arg0: i32, %arg1: i32) -> (i32, i32) {
    %c0_i32 = arith.constant 0 : i32
    %c0_i32_0 = arith.constant 0 : i32
    return %arg0, %c0_i32 : i32, i32
  }
  func.func @transform_1(%arg0: i32, %arg1: i32) -> (i32, i32, i32) {
    %c0_i32 = arith.constant 0 : i32
    %c0_i32_0 = arith.constant 0 : i32
    %c0_i32_1 = arith.constant 0 : i32
    return %arg1, %c0_i32, %c0_i32_0 : i32, i32, i32
  }
  func.func @transform_2(%arg0: i32, %arg1: i32) -> (i32, i32, i32) {
    %c0_i32 = arith.constant 0 : i32
    %c0_i32_0 = arith.constant 0 : i32
    %c0_i32_1 = arith.constant 0 : i32
    return %arg1, %c0_i32, %c0_i32_0 : i32, i32, i32
  }
  func.func @transform_3(%arg0: i32, %arg1: i32) -> (i32, i32, i32) {
    %c0_i32 = arith.constant 0 : i32
    %c0_i32_0 = arith.constant 0 : i32
    %c0_i32_1 = arith.constant 0 : i32
    return %arg1, %c0_i32, %c0_i32_0 : i32, i32, i32
  }
  func.func @transform_4(%arg0: i32, %arg1: i32) -> (i32, i32, i32) {
    %c0_i32 = arith.constant 0 : i32
    %c0_i32_0 = arith.constant 0 : i32
    %c0_i32_1 = arith.constant 0 : i32
    return %arg1, %c0_i32, %c0_i32_0 : i32, i32, i32
  }
  func.func @transform_5(%arg0: i32, %arg1: i32) -> (i32, i32, i32) {
    %c0_i32 = arith.constant 0 : i32
    %c0_i32_0 = arith.constant 0 : i32
    %c0_i32_1 = arith.constant 0 : i32
    return %arg1, %c0_i32, %c0_i32_0 : i32, i32, i32
  }
  func.func @transform_6(%arg0: i32, %arg1: i32) -> (i32, i32, i32) {
    %c0_i32 = arith.constant 0 : i32
    %c0_i32_0 = arith.constant 0 : i32
    %c0_i32_1 = arith.constant 0 : i32
    return %arg1, %c0_i32, %c0_i32_0 : i32, i32, i32
  }
  func.func @transform_7(%arg0: i32, %arg1: i32) -> (i32, i32, i32) {
    %c0_i32 = arith.constant 0 : i32
    %c0_i32_0 = arith.constant 0 : i32
    %c0_i32_1 = arith.constant 0 : i32
    return %arg1, %c0_i32, %c0_i32_0 : i32, i32, i32
  }
  func.func @transform_8(%arg0: i32, %arg1: i32) -> (i32, i32, i32) {
    %c0_i32 = arith.constant 0 : i32
    %c0_i32_0 = arith.constant 0 : i32
    %c0_i32_1 = arith.constant 0 : i32
    return %arg1, %c0_i32, %c0_i32_0 : i32, i32, i32
  }
  func.func @transform_9(%arg0: i32, %arg1: i32) -> (i32, i32, i32) {
    %c0_i32 = arith.constant 0 : i32
    %c0_i32_0 = arith.constant 0 : i32
    %c0_i32_1 = arith.constant 0 : i32
    return %arg1, %c0_i32, %c0_i32_0 : i32, i32, i32
  }
  func.func @transform_10(%arg0: i32, %arg1: i32) -> (i32, i32) {
    %c0_i32 = arith.constant 0 : i32
    %c0_i32_0 = arith.constant 0 : i32
    return %arg0, %c0_i32 : i32, i32
  }
}

</mosaic_0001>

<llo_original>
// kernel: tpu_custom_call.1
$region0: #{tpu_custom_call.1}
  #allocation0 [shape = 'u32[]', space=smem, size = 0x4, offset = 0x4, fixed_abs, tag = 'smem constant byte address 0x4 - core index']
  #allocation1 [shape = 'u32[144,128]{1,0:T(1,128)}', space=vmem, size = 0x12000, scoped, tag = 'internal scratch']
  %s0 = inlined_call_operand.hbm [shape: f32[16,32], index: 0, kind: input, shape index: {}]
  %s1 = inlined_call_operand.vmem [shape: bf16[2,32,96], index: 1, kind: input, shape index: {}]
  %s2 = inlined_call_operand.vmem [shape: bf16[2,32,32], index: 2, kind: input, shape index: {}]
  %s3 = inlined_call_operand.vmem [shape: f32[2,1,32], index: 3, kind: input, shape index: {}]
  %s4 = inlined_call_operand.vmem [shape: f32[2,2,32], index: 4, kind: input, shape index: {}]
  %s5 = inlined_call_operand.vmem [shape: bf16[2,32,64], index: 5, kind: input, shape index: {}]
  %s6 = inlined_call_operand.vmem [shape: f32[2,1,64], index: 6, kind: input, shape index: {}]
  %s7 = inlined_call_operand.vmem [shape: bf16[2,64,32], index: 7, kind: input, shape index: {}]
  %s8 = inlined_call_operand.vmem [shape: f32[2,1,32], index: 8, kind: input, shape index: {}]
  %s9 = inlined_call_operand.vmem [shape: f32[2,2,32], index: 9, kind: input, shape index: {}]
  %s10 = inlined_call_operand.hbm [shape: f32[16,32], index: 10, kind: output, shape index: {}]
  %s11 = sld [smem:[#allocation0]]
  $region81: #{tpu_custom_call.1} parent=0
    _
  %s13 = ssub.s32 1, %s11
  %s14 = scalar_select 0, %s13, %s11
  $region1: #{tpu_custom_call.1} parent=0
    #allocation2 [shape = 'u8[8192]{0}', space=vmem, size = 0x2000, scoped, tag = 'input window, operand 0']
    #allocation3 [shape = 's32[2]{0}', space=sflag, size = 0x8, scoped, tag = 'scoped memory for tpu_custom_call.1']
    #allocation4 [shape = 's32[2]{0}', space=sflag, size = 0x8, scoped, tag = 'scoped memory for tpu_custom_call.1']
    #allocation5 [shape = 'u8[8192]{0}', space=vmem, size = 0x2000, scoped, tag = 'output window, operand 0']
    %15 = vsyncpa [#allocation3], 0
    %s16 = scalar_lea.sflag [#allocation3], 1
    %17 = vsyncpa %s16, 0
    %18 = vsyncpa [#allocation4], 0
    %s19 = scalar_lea.sflag [#allocation4], 1
    %20 = vsyncpa %s19, 0
    loop: start=0, step=1, limit=6
    $region2: #{tpu_custom_call.1} parent=1 // loop_pre_header
      _
    $region3: #{tpu_custom_call.1} parent=1 // loop_header
      %s22 = sphi 0, %s26
      %p23 = scmp.ge.s32.totalorder %s22, 6
      %s29 = sphi 0, %s41
      %s30 = sphi 0, %s37
      %s31 = sphi 0, %s29
      %s32 = sphi 0, %s30
      %s33 = sphi 0, %s31
      %s34 = sphi 0, %s32
      %s44 = sphi 0, %s46
      %s47 = sphi 0, %s44
      %s48 = sphi 0, %s47
      %s64 = sphi 0, %s48
      %s70 = sphi 0, %s72
      %s73 = sphi 0, %s70
      %s74 = sphi 0, %s73
      %s90 = sphi 0, %s74
      %s96 = sphi 0, %s98
      %s99 = sphi 0, %s96
      %s100 = sphi 0, %s99
      %s116 = sphi 0, %s100
      %s122 = sphi 0, %s124
      %s125 = sphi 0, %s122
      %s126 = sphi 0, %s125
      %s142 = sphi 0, %s126
      %s148 = sphi 0, %s150
      %s151 = sphi 0, %s148
      %s152 = sphi 0, %s151
      %s168 = sphi 0, %s152
      %s174 = sphi 0, %s176
      %s177 = sphi 0, %s174
      %s178 = sphi 0, %s177
      %s194 = sphi 0, %s178
      %s200 = sphi 0, %s202
      %s203 = sphi 0, %s200
      %s204 = sphi 0, %s203
      %s220 = sphi 0, %s204
      %s226 = sphi 0, %s228
      %s229 = sphi 0, %s226
      %s230 = sphi 0, %s229
      %s246 = sphi 0, %s230
      %s252 = sphi 0, %s254
      %s255 = sphi 0, %s252
      %s256 = sphi 0, %s255
      %s272 = sphi 0, %s256
      %s278 = sphi 0, %s280
      %s281 = sphi 0, %s278
      %s282 = sphi 0, %s281
      %s298 = sphi 0, %s282
      %s304 = sphi 0, %s306
      %s307 = sphi 0, %s304
      %s308 = sphi 0, %s307
      %s324 = sphi 0, %s308
    $region4: #{tpu_custom_call.1} parent=1 // loop_header_branch
      %25 = sbr.rel (%p23) target = $region8
    $region5: #{tpu_custom_call.1} parent=1 // loop_body
      %s27 = ssub.s32 %s22, 1
      %s28 = ssub.s32 %s22, 2
      %s35 = sadd.s32 1, %s30
      %p36 = scmp.ge.s32.totalorder %s35, 2
      %s37 = scalar_select %p36, 0, %s35
      %s38 = sadd.s32 1, %s29
      %s39 = scalar_select %p36, %s38, %s29
      %p40 = scmp.ge.s32.totalorder %s39, 2
      %s41 = scalar_select %p40, 0, %s39
      %s42 = ssub.s32 %s29, %s41
      %p43 = scmp.eq.s32.totalorder %s42, 0
      %s45 = sadd.s32 %s44, 1
      %s46 = scalar_select %p43, %s44, %s45
      %p49 = pneg %p43
      %p50 = scmp.eq.s32.totalorder %s22, 3
      %p51 = por %p49, %p50
      %p52 = scmp.ne.s32.totalorder %s44, %s47
      %p53 = scmp.eq.s32.totalorder %s22, 0
      %p54 = por %p52, %p53
      %p55 = scmp.ne.s32.totalorder %s44, %s47
      %p56 = scmp.eq.s32.totalorder %s27, 3
      %p57 = por %p55, %p56
      %p58 = scmp.ne.s32.totalorder %s47, %s48
      %p59 = scmp.eq.s32.totalorder %s27, 0
      %p60 = por %p58, %p59
      %p61 = scmp.ne.s32.totalorder %s47, %s48
      %p62 = scmp.eq.s32.totalorder %s28, 3
      %p63 = por %p61, %p62
      %p65 = scmp.ne.s32.totalorder %s48, %s64
      %p66 = scmp.eq.s32.totalorder %s28, 0
      %p67 = por %p65, %p66
      %s68 = ssub.s32 %s30, %s37
      %p69 = scmp.eq.s32.totalorder %s68, 0
      %s71 = sadd.s32 %s70, 1
      %s72 = scalar_select %p69, %s70, %s71
      %p75 = pneg %p69
      %p76 = scmp.eq.s32.totalorder %s22, 3
      %p77 = por %p75, %p76
      %p78 = scmp.ne.s32.totalorder %s70, %s73
      %p79 = scmp.eq.s32.totalorder %s22, 0
      %p80 = por %p78, %p79
      %p81 = scmp.ne.s32.totalorder %s70, %s73
      %p82 = scmp.eq.s32.totalorder %s27, 3
      %p83 = por %p81, %p82
      %p84 = scmp.ne.s32.totalorder %s73, %s74
      %p85 = scmp.eq.s32.totalorder %s27, 0
      %p86 = por %p84, %p85
      %p87 = scmp.ne.s32.totalorder %s73, %s74
      %p88 = scmp.eq.s32.totalorder %s28, 3
      %p89 = por %p87, %p88
      %p91 = scmp.ne.s32.totalorder %s74, %s90
      %p92 = scmp.eq.s32.totalorder %s28, 0
      %p93 = por %p91, %p92
      %s94 = ssub.s32 %s30, %s37
      %p95 = scmp.eq.s32.totalorder %s94, 0
      %s97 = sadd.s32 %s96, 1
      %s98 = scalar_select %p95, %s96, %s97
      %p101 = pneg %p95
      %p102 = scmp.eq.s32.totalorder %s22, 3
      %p103 = por %p101, %p102
      %p104 = scmp.ne.s32.totalorder %s96, %s99
      %p105 = scmp.eq.s32.totalorder %s22, 0
      %p106 = por %p104, %p105
      %p107 = scmp.ne.s32.totalorder %s96, %s99
      %p108 = scmp.eq.s32.totalorder %s27, 3
      %p109 = por %p107, %p108
      %p110 = scmp.ne.s32.totalorder %s99, %s100
      %p111 = scmp.eq.s32.totalorder %s27, 0
      %p112 = por %p110, %p111
      %p113 = scmp.ne.s32.totalorder %s99, %s100
      %p114 = scmp.eq.s32.totalorder %s28, 3
      %p115 = por %p113, %p114
      %p117 = scmp.ne.s32.totalorder %s100, %s116
      %p118 = scmp.eq.s32.totalorder %s28, 0
      %p119 = por %p117, %p118
      %s120 = ssub.s32 %s30, %s37
      %p121 = scmp.eq.s32.totalorder %s120, 0
      %s123 = sadd.s32 %s122, 1
      %s124 = scalar_select %p121, %s122, %s123
      %p127 = pneg %p121
      %p128 = scmp.eq.s32.totalorder %s22, 3
      %p129 = por %p127, %p128
      %p130 = scmp.ne.s32.totalorder %s122, %s125
      %p131 = scmp.eq.s32.totalorder %s22, 0
      %p132 = por %p130, %p131
      %p133 = scmp.ne.s32.totalorder %s122, %s125
      %p134 = scmp.eq.s32.totalorder %s27, 3
      %p135 = por %p133, %p134
      %p136 = scmp.ne.s32.totalorder %s125, %s126
      %p137 = scmp.eq.s32.totalorder %s27, 0
      %p138 = por %p136, %p137
      %p139 = scmp.ne.s32.totalorder %s125, %s126
      %p140 = scmp.eq.s32.totalorder %s28, 3
      %p141 = por %p139, %p140
      %p143 = scmp.ne.s32.totalorder %s126, %s142
      %p144 = scmp.eq.s32.totalorder %s28, 0
      %p145 = por %p143, %p144
      %s146 = ssub.s32 %s30, %s37
      %p147 = scmp.eq.s32.totalorder %s146, 0
      %s149 = sadd.s32 %s148, 1
      %s150 = scalar_select %p147, %s148, %s149
      %p153 = pneg %p147
      %p154 = scmp.eq.s32.totalorder %s22, 3
      %p155 = por %p153, %p154
      %p156 = scmp.ne.s32.totalorder %s148, %s151
      %p157 = scmp.eq.s32.totalorder %s22, 0
      %p158 = por %p156, %p157
      %p159 = scmp.ne.s32.totalorder %s148, %s151
      %p160 = scmp.eq.s32.totalorder %s27, 3
      %p161 = por %p159, %p160
      %p162 = scmp.ne.s32.totalorder %s151, %s152
      %p163 = scmp.eq.s32.totalorder %s27, 0
      %p164 = por %p162, %p163
      %p165 = scmp.ne.s32.totalorder %s151, %s152
      %p166 = scmp.eq.s32.totalorder %s28, 3
      %p167 = por %p165, %p166
      %p169 = scmp.ne.s32.totalorder %s152, %s168
      %p170 = scmp.eq.s32.totalorder %s28, 0
      %p171 = por %p169, %p170
      %s172 = ssub.s32 %s30, %s37
      %p173 = scmp.eq.s32.totalorder %s172, 0
      %s175 = sadd.s32 %s174, 1
      %s176 = scalar_select %p173, %s174, %s175
      %p179 = pneg %p173
      %p180 = scmp.eq.s32.totalorder %s22, 3
      %p181 = por %p179, %p180
      %p182 = scmp.ne.s32.totalorder %s174, %s177
      %p183 = scmp.eq.s32.totalorder %s22, 0
      %p184 = por %p182, %p183
      %p185 = scmp.ne.s32.totalorder %s174, %s177
      %p186 = scmp.eq.s32.totalorder %s27, 3
      %p187 = por %p185, %p186
      %p188 = scmp.ne.s32.totalorder %s177, %s178
      %p189 = scmp.eq.s32.totalorder %s27, 0
      %p190 = por %p188, %p189
      %p191 = scmp.ne.s32.totalorder %s177, %s178
      %p192 = scmp.eq.s32.totalorder %s28, 3
      %p193 = por %p191, %p192
      %p195 = scmp.ne.s32.totalorder %s178, %s194
      %p196 = scmp.eq.s32.totalorder %s28, 0
      %p197 = por %p195, %p196
      %s198 = ssub.s32 %s30, %s37
      %p199 = scmp.eq.s32.totalorder %s198, 0
      %s201 = sadd.s32 %s200, 1
      %s202 = scalar_select %p199, %s200, %s201
      %p205 = pneg %p199
      %p206 = scmp.eq.s32.totalorder %s22, 3
      %p207 = por %p205, %p206
      %p208 = scmp.ne.s32.totalorder %s200, %s203
      %p209 = scmp.eq.s32.totalorder %s22, 0
      %p210 = por %p208, %p209
      %p211 = scmp.ne.s32.totalorder %s200, %s203
      %p212 = scmp.eq.s32.totalorder %s27, 3
      %p213 = por %p211, %p212
      %p214 = scmp.ne.s32.totalorder %s203, %s204
      %p215 = scmp.eq.s32.totalorder %s27, 0
      %p216 = por %p214, %p215
      %p217 = scmp.ne.s32.totalorder %s203, %s204
      %p218 = scmp.eq.s32.totalorder %s28, 3
      %p219 = por %p217, %p218
      %p221 = scmp.ne.s32.totalorder %s204, %s220
      %p222 = scmp.eq.s32.totalorder %s28, 0
      %p223 = por %p221, %p222
      %s224 = ssub.s32 %s30, %s37
      %p225 = scmp.eq.s32.totalorder %s224, 0
      %s227 = sadd.s32 %s226, 1
      %s228 = scalar_select %p225, %s226, %s227
      %p231 = pneg %p225
      %p232 = scmp.eq.s32.totalorder %s22, 3
      %p233 = por %p231, %p232
      %p234 = scmp.ne.s32.totalorder %s226, %s229
      %p235 = scmp.eq.s32.totalorder %s22, 0
      %p236 = por %p234, %p235
      %p237 = scmp.ne.s32.totalorder %s226, %s229
      %p238 = scmp.eq.s32.totalorder %s27, 3
      %p239 = por %p237, %p238
      %p240 = scmp.ne.s32.totalorder %s229, %s230
      %p241 = scmp.eq.s32.totalorder %s27, 0
      %p242 = por %p240, %p241
      %p243 = scmp.ne.s32.totalorder %s229, %s230
      %p244 = scmp.eq.s32.totalorder %s28, 3
      %p245 = por %p243, %p244
      %p247 = scmp.ne.s32.totalorder %s230, %s246
      %p248 = scmp.eq.s32.totalorder %s28, 0
      %p249 = por %p247, %p248
      %s250 = ssub.s32 %s30, %s37
      %p251 = scmp.eq.s32.totalorder %s250, 0
      %s253 = sadd.s32 %s252, 1
      %s254 = scalar_select %p251, %s252, %s253
      %p257 = pneg %p251
      %p258 = scmp.eq.s32.totalorder %s22, 3
      %p259 = por %p257, %p258
      %p260 = scmp.ne.s32.totalorder %s252, %s255
      %p261 = scmp.eq.s32.totalorder %s22, 0
      %p262 = por %p260, %p261
      %p263 = scmp.ne.s32.totalorder %s252, %s255
      %p264 = scmp.eq.s32.totalorder %s27, 3
      %p265 = por %p263, %p264
      %p266 = scmp.ne.s32.totalorder %s255, %s256
      %p267 = scmp.eq.s32.totalorder %s27, 0
      %p268 = por %p266, %p267
      %p269 = scmp.ne.s32.totalorder %s255, %s256
      %p270 = scmp.eq.s32.totalorder %s28, 3
      %p271 = por %p269, %p270
      %p273 = scmp.ne.s32.totalorder %s256, %s272
      %p274 = scmp.eq.s32.totalorder %s28, 0
      %p275 = por %p273, %p274
      %s276 = ssub.s32 %s30, %s37
      %p277 = scmp.eq.s32.totalorder %s276, 0
      %s279 = sadd.s32 %s278, 1
      %s280 = scalar_select %p277, %s278, %s279
      %p283 = pneg %p277
      %p284 = scmp.eq.s32.totalorder %s22, 3
      %p285 = por %p283, %p284
      %p286 = scmp.ne.s32.totalorder %s278, %s281
      %p287 = scmp.eq.s32.totalorder %s22, 0
      %p288 = por %p286, %p287
      %p289 = scmp.ne.s32.totalorder %s278, %s281
      %p290 = scmp.eq.s32.totalorder %s27, 3
      %p291 = por %p289, %p290
      %p292 = scmp.ne.s32.totalorder %s281, %s282
      %p293 = scmp.eq.s32.totalorder %s27, 0
      %p294 = por %p292, %p293
      %p295 = scmp.ne.s32.totalorder %s281, %s282
      %p296 = scmp.eq.s32.totalorder %s28, 3
      %p297 = por %p295, %p296
      %p299 = scmp.ne.s32.totalorder %s282, %s298
      %p300 = scmp.eq.s32.totalorder %s28, 0
      %p301 = por %p299, %p300
      %s302 = ssub.s32 %s29, %s41
      %p303 = scmp.eq.s32.totalorder %s302, 0
      %s305 = sadd.s32 %s304, 1
      %s306 = scalar_select %p303, %s304, %s305
      %p309 = pneg %p303
      %p310 = scmp.eq.s32.totalorder %s22, 3
      %p311 = por %p309, %p310
      %p312 = scmp.ne.s32.totalorder %s304, %s307
      %p313 = scmp.eq.s32.totalorder %s22, 0
      %p314 = por %p312, %p313
      %p315 = scmp.ne.s32.totalorder %s304, %s307
      %p316 = scmp.eq.s32.totalorder %s27, 3
      %p317 = por %p315, %p316
      %p318 = scmp.ne.s32.totalorder %s307, %s308
      %p319 = scmp.eq.s32.totalorder %s27, 0
      %p320 = por %p318, %p319
      %p321 = scmp.ne.s32.totalorder %s307, %s308
      %p322 = scmp.eq.s32.totalorder %s28, 3
      %p323 = por %p321, %p322
      %p325 = scmp.ne.s32.totalorder %s308, %s324
      %p326 = scmp.eq.s32.totalorder %s28, 0
      %p327 = por %p325, %p326
      %p328 = scmp.le.s32.totalorder 1, %s22
      %p329 = scmp.lt.s32.totalorder %s22, 5
      %p330 = pnand %p328, %p329
      %p331 = pneg %p330
      // Predicated region
      $region9: #{tpu_custom_call.1} parent=5 // pred_check
        _
      $region10: #{tpu_custom_call.1} parent=5 // pred_check_branch
        %333 = sbr.rel (%p330) target = $region12
      $region11: #{tpu_custom_call.1} parent=5 // pred_region
        %s334 = ssub.s32 %s22, 1
      $region12: #{tpu_custom_call.1} parent=5 // pred_fallthru
        _
      %p335 = scmp.lt.s32.totalorder %s22, 4
      // Predicated region
      $region13: #{tpu_custom_call.1} parent=5 // pred_check
        %p336 = pneg %p335
      $region14: #{tpu_custom_call.1} parent=5 // pred_check_branch
        %338 = sbr.rel (%p336) target = $region16
      $region15: #{tpu_custom_call.1} parent=5 // pred_region
        // Predicated region
        $region17: #{tpu_custom_call.1} parent=15 // pred_check
          %p339 = pneg %p54
        $region18: #{tpu_custom_call.1} parent=15 // pred_check_branch
          %341 = sbr.rel (%p339) target = $region20
        $region19: #{tpu_custom_call.1} parent=15 // pred_region
          %s342 = sand.u32 %s44, 1
          %s343 = scalar_lea.sflag [#allocation3], %s342
          %s344 = sand.u32 %s44, 1
          %s345 = smul.addr %s344, 8
          %s346 = scalar_lea.vmem [#allocation2], %s345
          %s348 = ssub.s32 128, 128
          %349 = vsyncadd %s343, %s348
          %s350 = smul.addr %s29, 128
          %s351 = scalar_lea.hbm %s0, %s350
          %s353 = sshll.u32 %s346, 4
          %s354 = int_to_ptr.vmem [resolvable:$true] %s353
          %356 = dma.hbm_to_vmem [thread:$0]  %s351, 128, %s354, %s343
        $region20: #{tpu_custom_call.1} parent=15 // pred_fallthru
          _
        // Predicated region
        $region21: #{tpu_custom_call.1} parent=15 // pred_check
          %p357 = pneg %p80
        $region22: #{tpu_custom_call.1} parent=15 // pred_check_branch
          %359 = sbr.rel (%p357) target = $region24
        $region23: #{tpu_custom_call.1} parent=15 // pred_region
          %p360 = scmp.lt.s32.totalorder %s30, 1
          %s361 = scalar_select %p360, %s30, 1
          %s362 = smul.addr %s361, 4
          %s363 = smul.addr %s362, 4
          %s364 = scalar_lea.vmem %s1, %s363
        $region24: #{tpu_custom_call.1} parent=15 // pred_fallthru
          _
        // Predicated region
        $region25: #{tpu_custom_call.1} parent=15 // pred_check
          %p365 = pneg %p106
        $region26: #{tpu_custom_call.1} parent=15 // pred_check_branch
          %367 = sbr.rel (%p365) target = $region28
        $region27: #{tpu_custom_call.1} parent=15 // pred_region
          %p368 = scmp.lt.s32.totalorder %s30, 1
          %s369 = scalar_select %p368, %s30, 1
          %s370 = smul.addr %s369, 4
          %s371 = smul.addr %s370, 4
          %s372 = scalar_lea.vmem %s2, %s371
        $region28: #{tpu_custom_call.1} parent=15 // pred_fallthru
          _
        // Predicated region
        $region29: #{tpu_custom_call.1} parent=15 // pred_check
          %p373 = pneg %p132
        $region30: #{tpu_custom_call.1} parent=15 // pred_check_branch
          %375 = sbr.rel (%p373) target = $region32
        $region31: #{tpu_custom_call.1} parent=15 // pred_region
          %p376 = scmp.lt.s32.totalorder %s30, 1
          %s377 = scalar_select %p376, %s30, 1
          %s378 = scalar_lea.vmem %s3, %s377
        $region32: #{tpu_custom_call.1} parent=15 // pred_fallthru
          _
        // Predicated region
        $region33: #{tpu_custom_call.1} parent=15 // pred_check
          %p379 = pneg %p158
        $region34: #{tpu_custom_call.1} parent=15 // pred_check_branch
          %381 = sbr.rel (%p379) target = $region36
        $region35: #{tpu_custom_call.1} parent=15 // pred_region
          %p382 = scmp.lt.s32.totalorder %s30, 1
          %s383 = scalar_select %p382, %s30, 1
          %s384 = smul.addr %s383, 2
          %s385 = scalar_lea.vmem %s4, %s384
        $region36: #{tpu_custom_call.1} parent=15 // pred_fallthru
          _
        // Predicated region
        $region37: #{tpu_custom_call.1} parent=15 // pred_check
          %p386 = pneg %p184
        $region38: #{tpu_custom_call.1} parent=15 // pred_check_branch
          %388 = sbr.rel (%p386) target = $region40
        $region39: #{tpu_custom_call.1} parent=15 // pred_region
          %p389 = scmp.lt.s32.totalorder %s30, 1
          %s390 = scalar_select %p389, %s30, 1
          %s391 = smul.addr %s390, 4
          %s392 = smul.addr %s391, 4
          %s393 = scalar_lea.vmem %s5, %s392
        $region40: #{tpu_custom_call.1} parent=15 // pred_fallthru
          _
        // Predicated region
        $region41: #{tpu_custom_call.1} parent=15 // pred_check
          %p394 = pneg %p210
        $region42: #{tpu_custom_call.1} parent=15 // pred_check_branch
          %396 = sbr.rel (%p394) target = $region44
        $region43: #{tpu_custom_call.1} parent=15 // pred_region
          %p397 = scmp.lt.s32.totalorder %s30, 1
          %s398 = scalar_select %p397, %s30, 1
          %s399 = scalar_lea.vmem %s6, %s398
        $region44: #{tpu_custom_call.1} parent=15 // pred_fallthru
          _
        // Predicated region
        $region45: #{tpu_custom_call.1} parent=15 // pred_check
          %p400 = pneg %p236
        $region46: #{tpu_custom_call.1} parent=15 // pred_check_branch
          %402 = sbr.rel (%p400) target = $region48
        $region47: #{tpu_custom_call.1} parent=15 // pred_region
          %p403 = scmp.lt.s32.totalorder %s30, 1
          %s404 = scalar_select %p403, %s30, 1
          %s405 = smul.addr %s404, 8
          %s406 = smul.addr %s405, 4
          %s407 = scalar_lea.vmem %s7, %s406
        $region48: #{tpu_custom_call.1} parent=15 // pred_fallthru
          _
        // Predicated region
        $region49: #{tpu_custom_call.1} parent=15 // pred_check
          %p408 = pneg %p262
        $region50: #{tpu_custom_call.1} parent=15 // pred_check_branch
          %410 = sbr.rel (%p408) target = $region52
        $region51: #{tpu_custom_call.1} parent=15 // pred_region
          %p411 = scmp.lt.s32.totalorder %s30, 1
          %s412 = scalar_select %p411, %s30, 1
          %s413 = scalar_lea.vmem %s8, %s412
        $region52: #{tpu_custom_call.1} parent=15 // pred_fallthru
          _
        // Predicated region
        $region53: #{tpu_custom_call.1} parent=15 // pred_check
          %p414 = pneg %p288
        $region54: #{tpu_custom_call.1} parent=15 // pred_check_branch
          %416 = sbr.rel (%p414) target = $region56
        $region55: #{tpu_custom_call.1} parent=15 // pred_region
          %p417 = scmp.lt.s32.totalorder %s30, 1
          %s418 = scalar_select %p417, %s30, 1
          %s419 = smul.addr %s418, 2
          %s420 = scalar_lea.vmem %s9, %s419
        $region56: #{tpu_custom_call.1} parent=15 // pred_fallthru
          _
      $region16: #{tpu_custom_call.1} parent=5 // pred_fallthru
        _
      %p421 = scmp.le.s32.totalorder 1, %s22
      %p422 = scmp.lt.s32.totalorder %s22, 5
      %p423 = pnand %p421, %p422
      %p424 = pneg %p423
      // Predicated region
      $region57: #{tpu_custom_call.1} parent=5 // pred_check
        _
      $region58: #{tpu_custom_call.1} parent=5 // pred_check_branch
        %426 = sbr.rel (%p423) target = $region60
      $region59: #{tpu_custom_call.1} parent=5 // pred_region
        %s427 = ssub.s32 %s22, 1
        %s428 = sand.u32 %s47, 1
        %s429 = scalar_lea.sflag [#allocation3], %s428
        %s430 = sand.u32 %s47, 1
        %s431 = smul.addr %s430, 8
        %s432 = scalar_lea.vmem [#allocation2], %s431
        // Predicated region
        $region61: #{tpu_custom_call.1} parent=59 // pred_check
          %p433 = pneg %p60
        $region62: #{tpu_custom_call.1} parent=59 // pred_check_branch
          %435 = sbr.rel (%p433) target = $region64
        $region63: #{tpu_custom_call.1} parent=59 // pred_region
          %436 = dma.done %s429, 128
        $region64: #{tpu_custom_call.1} parent=59 // pred_fallthru
          _
        %s437 = sand.u32 %s47, 1
        %s438 = scalar_lea.sflag [#allocation3], %s437
        %s439 = sand.u32 %s47, 1
        %s440 = smul.addr %s439, 8
        %s441 = scalar_lea.vmem [#allocation2], %s440
        %p442 = pneg %p60
        %p443 = pneg %p57
        %p444 = scmp.lt.s32.totalorder %s32, 1
        %s445 = scalar_select %p444, %s32, 1
        %s446 = smul.addr %s445, 4
        %s447 = smul.addr %s446, 4
        %s448 = scalar_lea.vmem %s1, %s447
        %p449 = pneg %p86
        %p450 = pneg %p83
        %p451 = scmp.lt.s32.totalorder %s32, 1
        %s452 = scalar_select %p451, %s32, 1
        %s453 = smul.addr %s452, 4
        %s454 = smul.addr %s453, 4
        %s455 = scalar_lea.vmem %s2, %s454
        %p456 = pneg %p112
        %p457 = pneg %p109
        %p458 = scmp.lt.s32.totalorder %s32, 1
        %s459 = scalar_select %p458, %s32, 1
        %s460 = scalar_lea.vmem %s3, %s459
        %p461 = pneg %p138
        %p462 = pneg %p135
        %p463 = scmp.lt.s32.totalorder %s32, 1
        %s464 = scalar_select %p463, %s32, 1
        %s465 = smul.addr %s464, 2
        %s466 = scalar_lea.vmem %s4, %s465
        %p467 = pneg %p164
        %p468 = pneg %p161
        %p469 = scmp.lt.s32.totalorder %s32, 1
        %s470 = scalar_select %p469, %s32, 1
        %s471 = smul.addr %s470, 4
        %s472 = smul.addr %s471, 4
        %s473 = scalar_lea.vmem %s5, %s472
        %p474 = pneg %p190
        %p475 = pneg %p187
        %p476 = scmp.lt.s32.totalorder %s32, 1
        %s477 = scalar_select %p476, %s32, 1
        %s478 = scalar_lea.vmem %s6, %s477
        %p479 = pneg %p216
        %p480 = pneg %p213
        %p481 = scmp.lt.s32.totalorder %s32, 1
        %s482 = scalar_select %p481, %s32, 1
        %s483 = smul.addr %s482, 8
        %s484 = smul.addr %s483, 4
        %s485 = scalar_lea.vmem %s7, %s484
        %p486 = pneg %p242
        %p487 = pneg %p239
        %p488 = scmp.lt.s32.totalorder %s32, 1
        %s489 = scalar_select %p488, %s32, 1
        %s490 = scalar_lea.vmem %s8, %s489
        %p491 = pneg %p268
        %p492 = pneg %p265
        %p493 = scmp.lt.s32.totalorder %s32, 1
        %s494 = scalar_select %p493, %s32, 1
        %s495 = smul.addr %s494, 2
        %s496 = scalar_lea.vmem %s9, %s495
        %p497 = pneg %p294
        %p498 = pneg %p291
        %p499 = pneg %p320
        %p500 = pneg %p317
        %s501 = sand.u32 %s307, 1
        %s502 = scalar_lea.sflag [#allocation4], %s501
        %s503 = sand.u32 %s307, 1
        %s504 = smul.addr %s503, 8
        %s505 = scalar_lea.vmem [#allocation5], %s504
        %p506 = scmp.lt.s32.totalorder %s32, 1
        %s507 = scalar_select %p506, %s32, 1
        %s508 = smul.addr %s507, 4
        %s509 = smul.addr %s508, 4
        %s510 = scalar_lea.vmem %s1, %s509
        %p511 = scmp.lt.s32.totalorder %s32, 1
        %s512 = scalar_select %p511, %s32, 1
        %s513 = smul.addr %s512, 4
        %s514 = smul.addr %s513, 4
        %s515 = scalar_lea.vmem %s2, %s514
        %p516 = scmp.lt.s32.totalorder %s32, 1
        %s517 = scalar_select %p516, %s32, 1
        %s518 = scalar_lea.vmem %s3, %s517
        %p519 = scmp.lt.s32.totalorder %s32, 1
        %s520 = scalar_select %p519, %s32, 1
        %s521 = smul.addr %s520, 2
        %s522 = scalar_lea.vmem %s4, %s521
        %p523 = scmp.lt.s32.totalorder %s32, 1
        %s524 = scalar_select %p523, %s32, 1
        %s525 = smul.addr %s524, 4
        %s526 = smul.addr %s525, 4
        %s527 = scalar_lea.vmem %s5, %s526
        %p528 = scmp.lt.s32.totalorder %s32, 1
        %s529 = scalar_select %p528, %s32, 1
        %s530 = scalar_lea.vmem %s6, %s529
        %p531 = scmp.lt.s32.totalorder %s32, 1
        %s532 = scalar_select %p531, %s32, 1
        %s533 = smul.addr %s532, 8
        %s534 = smul.addr %s533, 4
        %s535 = scalar_lea.vmem %s7, %s534
        %p536 = scmp.lt.s32.totalorder %s32, 1
        %s537 = scalar_select %p536, %s32, 1
        %s538 = scalar_lea.vmem %s8, %s537
        %p539 = scmp.lt.s32.totalorder %s32, 1
        %s540 = scalar_select %p539, %s32, 1
        %s541 = smul.addr %s540, 2
        %s542 = scalar_lea.vmem %s9, %s541
        %p544 = scmp.eq.s32.totalorder %s32, 0
        // Predicated region
        $region65: #{tpu_custom_call.1} parent=59 // pred_check
          %p545 = pneg %p544
        $region66: #{tpu_custom_call.1} parent=59 // pred_check_branch
          %547 = sbr.rel (%p545) target = $region68
        $region67: #{tpu_custom_call.1} parent=59 // pred_region
          %v548 = vld [vmem:[%s432] sm:$0xff]
          %vm549 = vcmask 261120
          %550 = vst.msk [vmem:[%s505] sm:$0xff] %vm549, %v548
        $region68: #{tpu_custom_call.1} parent=59 // pred_fallthru
          _
        %v551 = vld [vmem:[%s505] sm:$0xff]
        %v552 = vpack.c.bf16 %v551, %v551
        %v553 = vld [vmem:[%s510] sm:$0xf]
        %v554 = vld [vmem:[%s510 + $0x4] sm:$0xf]
        %v555 = vld [vmem:[%s510 + $0x8] sm:$0xf]
        %v556 = vld [vmem:[%s510 + $0xc] sm:$0xf]
        %v561 = vunpack.c.l.b16 %v553
        %v562 = vunpack.c.l.b16 %v554
        %v563 = vunpack.c.l.b16 %v555
        %v564 = vunpack.c.l.b16 %v556
        %v565 = vpack.c.b16 %v562, %v561
        %v566 = vpack.c.b16 %v564, %v563
        %vm569 = vcmask 261120
        %v571 = vsel %vm569, %v552, 0
        %573 = vmatprep.subr.bf16.mxu0 0
        %574 = vmatpush1.bf16.msra.mxu0 %v565
        %575 = vmatprep.subr.bf16.mxu0 0
        %576 = vmatpush1.bf16.msra.mxu0 %v566
        %577 = vmatprep.subr.bf16.mxu0 0
        %578 = vmatpush1.bf16.msra.mxu0 0
        %579 = vmatprep.subr.bf16.mxu0 0
        %580 = vmatpush1.bf16.msra.mxu0 0
        %581 = vmatprep.subr.bf16.mxu0 0
        %582 = vmatpush1.bf16.msra.mxu0 0
        %583 = vmatprep.subr.bf16.mxu0 0
        %584 = vmatpush1.bf16.msra.mxu0 0
        %585 = vmatprep.subr.bf16.mxu0 0
        %586 = vmatpush1.bf16.msra.mxu0 0
        %587 = vmatprep.subr.bf16.mxu0 0
        %588 = vmatpush1.bf16.msra.mxu0 0
        %589 = vmatprep.subr.bf16.mxu0 0
        %590 = vmatpush1.bf16.msra.mxu0 0
        %591 = vmatprep.subr.bf16.mxu0 0
        %592 = vmatpush1.bf16.msra.mxu0 0
        %593 = vmatprep.subr.bf16.mxu0 0
        %594 = vmatpush1.bf16.msra.mxu0 0
        %595 = vmatprep.subr.bf16.mxu0 0
        %596 = vmatpush1.bf16.msra.mxu0 0
        %597 = vmatprep.subr.bf16.mxu0 0
        %598 = vmatpush1.bf16.msra.mxu0 0
        %599 = vmatprep.subr.bf16.mxu0 0
        %600 = vmatpush1.bf16.msra.mxu0 0
        %601 = vmatprep.subr.bf16.mxu0 0
        %602 = vmatpush1.bf16.msra.mxu0 0
        %603 = vmatprep.subr.bf16.mxu0 0
        %604 = vmatpush1.bf16.msra.mxu0 0
        %605 = vmatprep.mubr.bf16.mxu0 0
        %606 = vmatmul.mubr.bf16.gmra.mrb[0].mxu0 %v571
        %v607 = vpop.f32.mrb[0].mxu0
        %v608 = vadd.f32 0.0, %v607
        %v609 = vpop.f32.mrb[0].mxu0
        %v610 = vpop.f32.mrb[0].mxu0
        %v611 = vpop.f32.mrb[0].mxu0
        %612 = vdwg.mxu0
        %v613 = vpack.c.bf16 %v608, %v608
        %615 = vrot.lane.b32.xlu0 %v613, 96
        %v616 = vpop.permute.xlu0 %615
        %vm617 = vcmask 64512
        %v619 = vsel %vm617, %v613, 0
        %v622 = vsel %vm617, %v616, 0
        %624 = vmatprep.subr.bf16.mxu0 0
        %625 = vmatpush1.bf16.xpose.msra.mxu0 %v622
        %626 = vmatprep.subr.bf16.mxu0 0
        %627 = vmatpush1.bf16.xpose.msra.mxu0 0
        %628 = vmatprep.subr.bf16.mxu0 0
        %629 = vmatpush1.bf16.xpose.msra.mxu0 0
        %630 = vmatprep.subr.bf16.mxu0 0
        %631 = vmatpush1.bf16.xpose.msra.mxu0 0
        %632 = vmatprep.subr.bf16.mxu0 0
        %633 = vmatpush1.bf16.xpose.msra.mxu0 0
        %634 = vmatprep.subr.bf16.mxu0 0
        %635 = vmatpush1.bf16.xpose.msra.mxu0 0
        %636 = vmatprep.subr.bf16.mxu0 0
        %637 = vmatpush1.bf16.xpose.msra.mxu0 0
        %638 = vmatprep.subr.bf16.mxu0 0
        %639 = vmatpush1.bf16.xpose.msra.mxu0 0
        %640 = vmatprep.subr.bf16.mxu0 0
        %641 = vmatpush1.bf16.xpose.msra.mxu0 0
        %642 = vmatprep.subr.bf16.mxu0 0
        %643 = vmatpush1.bf16.xpose.msra.mxu0 0
        %644 = vmatprep.subr.bf16.mxu0 0
        %645 = vmatpush1.bf16.xpose.msra.mxu0 0
        %646 = vmatprep.subr.bf16.mxu0 0
        %647 = vmatpush1.bf16.xpose.msra.mxu0 0
        %648 = vmatprep.subr.bf16.mxu0 0
        %649 = vmatpush1.bf16.xpose.msra.mxu0 0
        %650 = vmatprep.subr.bf16.mxu0 0
        %651 = vmatpush1.bf16.xpose.msra.mxu0 0
        %652 = vmatprep.subr.bf16.mxu0 0
        %653 = vmatpush1.bf16.xpose.msra.mxu0 0
        %654 = vmatprep.subr.bf16.mxu0 0
        %655 = vmatpush1.bf16.xpose.msra.mxu0 0
        %656 = vmatprep.mubr.bf16.mxu0 0
        %657 = vmatmul.mubr.bf16.gmra.mrb[0].mxu0 %v619
        %v658 = vpop.f32.mrb[0].mxu0
        %v659 = vadd.f32 0.0, %v658
        %v660 = vpop.f32.mrb[0].mxu0
        %v661 = vpop.f32.mrb[0].mxu0
        %v662 = vpop.f32.mrb[0].mxu0
        %663 = vdwg.mxu0
        %v664 = vsel %vm617, %v659, -inf
        %665 = vmax.xlane.f32.xlu0 %v664
        %v666 = vpop.xlane.xlu0 %665
        %v667 = vsub.f32 %v659, %v666
        %v668 = vmul.f32 %v667, 1.442695
        %v669 = vpow.pop %v668
        %v670 = vsel %vm617, %v669, 0.0
        %671 = vadd.xlane.f32.xlu0 %v670
        %v672 = vpop.xlane.xlu0 %671
        %v673 = vrcp.pop %v672
        %v674 = vmul.f32 %v669, %v673
        %v675 = vpack.c.bf16 %v674, %v674
        %676 = vrot.lane.b32.xlu0 %v613, 64
        %v677 = vpop.permute.xlu0 %676
        %v679 = vsel %vm617, %v675, 0
        %vm681 = vcmask 1043456
        %v683 = vsel %vm681, %v677, 0
        %685 = vmatprep.subr.bf16.mxu0 0
        %686 = vmatpush1.bf16.msra.mxu0 %v683
        %687 = vmatprep.subr.bf16.mxu0 0
        %688 = vmatpush1.bf16.msra.mxu0 0
        %689 = vmatprep.subr.bf16.mxu0 0
        %690 = vmatpush1.bf16.msra.mxu0 0
        %691 = vmatprep.subr.bf16.mxu0 0
        %692 = vmatpush1.bf16.msra.mxu0 0
        %693 = vmatprep.subr.bf16.mxu0 0
        %694 = vmatpush1.bf16.msra.mxu0 0
        %695 = vmatprep.subr.bf16.mxu0 0
        %696 = vmatpush1.bf16.msra.mxu0 0
        %697 = vmatprep.subr.bf16.mxu0 0
        %698 = vmatpush1.bf16.msra.mxu0 0
        %699 = vmatprep.subr.bf16.mxu0 0
        %700 = vmatpush1.bf16.msra.mxu0 0
        %701 = vmatprep.subr.bf16.mxu0 0
        %702 = vmatpush1.bf16.msra.mxu0 0
        %703 = vmatprep.subr.bf16.mxu0 0
        %704 = vmatpush1.bf16.msra.mxu0 0
        %705 = vmatprep.subr.bf16.mxu0 0
        %706 = vmatpush1.bf16.msra.mxu0 0
        %707 = vmatprep.subr.bf16.mxu0 0
        %708 = vmatpush1.bf16.msra.mxu0 0
        %709 = vmatprep.subr.bf16.mxu0 0
        %710 = vmatpush1.bf16.msra.mxu0 0
        %711 = vmatprep.subr.bf16.mxu0 0
        %712 = vmatpush1.bf16.msra.mxu0 0
        %713 = vmatprep.subr.bf16.mxu0 0
        %714 = vmatpush1.bf16.msra.mxu0 0
        %715 = vmatprep.subr.bf16.mxu0 0
        %716 = vmatpush1.bf16.msra.mxu0 0
        %717 = vmatprep.mubr.bf16.mxu0 0
        %718 = vmatmul.mubr.bf16.gmra.mrb[0].mxu0 %v679
        %v719 = vpop.f32.mrb[0].mxu0
        %v720 = vadd.f32 0.0, %v719
        %v721 = vpop.f32.mrb[0].mxu0
        %v722 = vpop.f32.mrb[0].mxu0
        %v723 = vpop.f32.mrb[0].mxu0
        %724 = vdwg.mxu0
        %725 = vrot.lane.b32.xlu0 %v613, 120
        %v726 = vpop.permute.xlu0 %725
        %727 = vrot.lane.b32.xlu0 %v613, 88
        %v728 = vpop.permute.xlu0 %727
        %v730 = vsel %vm617, %v726, 0
        %v733 = vsel %vm617, %v728, 0
        %735 = vmatprep.subr.bf16.mxu0 0
        %736 = vmatpush1.bf16.xpose.msra.mxu0 %v733
        %737 = vmatprep.subr.bf16.mxu0 0
        %738 = vmatpush1.bf16.xpose.msra.mxu0 0
        %739 = vmatprep.subr.bf16.mxu0 0
        %740 = vmatpush1.bf16.xpose.msra.mxu0 0
        %741 = vmatprep.subr.bf16.mxu0 0
        %742 = vmatpush1.bf16.xpose.msra.mxu0 0
        %743 = vmatprep.subr.bf16.mxu0 0
        %744 = vmatpush1.bf16.xpose.msra.mxu0 0
        %745 = vmatprep.subr.bf16.mxu0 0
        %746 = vmatpush1.bf16.xpose.msra.mxu0 0
        %747 = vmatprep.subr.bf16.mxu0 0
        %748 = vmatpush1.bf16.xpose.msra.mxu0 0
        %749 = vmatprep.subr.bf16.mxu0 0
        %750 = vmatpush1.bf16.xpose.msra.mxu0 0
        %751 = vmatprep.subr.bf16.mxu0 0
        %752 = vmatpush1.bf16.xpose.msra.mxu0 0
        %753 = vmatprep.subr.bf16.mxu0 0
        %754 = vmatpush1.bf16.xpose.msra.mxu0 0
        %755 = vmatprep.subr.bf16.mxu0 0
        %756 = vmatpush1.bf16.xpose.msra.mxu0 0
        %757 = vmatprep.subr.bf16.mxu0 0
        %758 = vmatpush1.bf16.xpose.msra.mxu0 0
        %759 = vmatprep.subr.bf16.mxu0 0
        %760 = vmatpush1.bf16.xpose.msra.mxu0 0
        %761 = vmatprep.subr.bf16.mxu0 0
        %762 = vmatpush1.bf16.xpose.msra.mxu0 0
        %763 = vmatprep.subr.bf16.mxu0 0
        %764 = vmatpush1.bf16.xpose.msra.mxu0 0
        %765 = vmatprep.subr.bf16.mxu0 0
        %766 = vmatpush1.bf16.xpose.msra.mxu0 0
        %767 = vmatprep.mubr.bf16.mxu0 0
        %768 = vmatmul.mubr.bf16.gmra.mrb[0].mxu0 %v730
        %v769 = vpop.f32.mrb[0].mxu0
        %v770 = vadd.f32 0.0, %v769
        %v771 = vpop.f32.mrb[0].mxu0
        %v772 = vpop.f32.mrb[0].mxu0
        %v773 = vpop.f32.mrb[0].mxu0
        %774 = vdwg.mxu0
        %v775 = vsel %vm617, %v770, -inf
        %776 = vmax.xlane.f32.xlu0 %v775
        %v777 = vpop.xlane.xlu0 %776
        %v778 = vsub.f32 %v770, %v777
        %v779 = vmul.f32 %v778, 1.442695
        %v780 = vpow.pop %v779
        %v781 = vsel %vm617, %v780, 0.0
        %782 = vadd.xlane.f32.xlu0 %v781
        %v783 = vpop.xlane.xlu0 %782
        %v784 = vrcp.pop %v783
        %v785 = vmul.f32 %v780, %v784
        %v786 = vpack.c.bf16 %v785, %v785
        %787 = vrot.lane.b32.xlu0 %v613, 56
        %v788 = vpop.permute.xlu0 %787
        %v790 = vsel %vm617, %v786, 0
        %v793 = vsel %vm681, %v788, 0
        %795 = vmatprep.subr.bf16.mxu0 0
        %796 = vmatpush1.bf16.msra.mxu0 %v793
        %797 = vmatprep.subr.bf16.mxu0 0
        %798 = vmatpush1.bf16.msra.mxu0 0
        %799 = vmatprep.subr.bf16.mxu0 0
        %800 = vmatpush1.bf16.msra.mxu0 0
        %801 = vmatprep.subr.bf16.mxu0 0
        %802 = vmatpush1.bf16.msra.mxu0 0
        %803 = vmatprep.subr.bf16.mxu0 0
        %804 = vmatpush1.bf16.msra.mxu0 0
        %805 = vmatprep.subr.bf16.mxu0 0
        %806 = vmatpush1.bf16.msra.mxu0 0
        %807 = vmatprep.subr.bf16.mxu0 0
        %808 = vmatpush1.bf16.msra.mxu0 0
        %809 = vmatprep.subr.bf16.mxu0 0
        %810 = vmatpush1.bf16.msra.mxu0 0
        %811 = vmatprep.subr.bf16.mxu0 0
        %812 = vmatpush1.bf16.msra.mxu0 0
        %813 = vmatprep.subr.bf16.mxu0 0
        %814 = vmatpush1.bf16.msra.mxu0 0
        %815 = vmatprep.subr.bf16.mxu0 0
        %816 = vmatpush1.bf16.msra.mxu0 0
        %817 = vmatprep.subr.bf16.mxu0 0
        %818 = vmatpush1.bf16.msra.mxu0 0
        %819 = vmatprep.subr.bf16.mxu0 0
        %820 = vmatpush1.bf16.msra.mxu0 0
        %821 = vmatprep.subr.bf16.mxu0 0
        %822 = vmatpush1.bf16.msra.mxu0 0
        %823 = vmatprep.subr.bf16.mxu0 0
        %824 = vmatpush1.bf16.msra.mxu0 0
        %825 = vmatprep.subr.bf16.mxu0 0
        %826 = vmatpush1.bf16.msra.mxu0 0
        %827 = vmatprep.mubr.bf16.mxu0 0
        %828 = vmatmul.mubr.bf16.gmra.mrb[0].mxu0 %v790
        %v829 = vpop.f32.mrb[0].mxu0
        %v830 = vadd.f32 0.0, %v829
        %v831 = vpop.f32.mrb[0].mxu0
        %v832 = vpop.f32.mrb[0].mxu0
        %v833 = vpop.f32.mrb[0].mxu0
        %834 = vdwg.mxu0
        %835 = vrot.lane.b32.xlu0 %v613, 112
        %v836 = vpop.permute.xlu0 %835
        %837 = vrot.lane.b32.xlu0 %v613, 80
        %v838 = vpop.permute.xlu0 %837
        %v840 = vsel %vm617, %v836, 0
        %v843 = vsel %vm617, %v838, 0
        %845 = vmatprep.subr.bf16.mxu0 0
        %846 = vmatpush1.bf16.xpose.msra.mxu0 %v843
        %847 = vmatprep.subr.bf16.mxu0 0
        %848 = vmatpush1.bf16.xpose.msra.mxu0 0
        %849 = vmatprep.subr.bf16.mxu0 0
        %850 = vmatpush1.bf16.xpose.msra.mxu0 0
        %851 = vmatprep.subr.bf16.mxu0 0
        %852 = vmatpush1.bf16.xpose.msra.mxu0 0
        %853 = vmatprep.subr.bf16.mxu0 0
        %854 = vmatpush1.bf16.xpose.msra.mxu0 0
        %855 = vmatprep.subr.bf16.mxu0 0
        %856 = vmatpush1.bf16.xpose.msra.mxu0 0
        %857 = vmatprep.subr.bf16.mxu0 0
        %858 = vmatpush1.bf16.xpose.msra.mxu0 0
        %859 = vmatprep.subr.bf16.mxu0 0
        %860 = vmatpush1.bf16.xpose.msra.mxu0 0
        %861 = vmatprep.subr.bf16.mxu0 0
        %862 = vmatpush1.bf16.xpose.msra.mxu0 0
        %863 = vmatprep.subr.bf16.mxu0 0
        %864 = vmatpush1.bf16.xpose.msra.mxu0 0
        %865 = vmatprep.subr.bf16.mxu0 0
        %866 = vmatpush1.bf16.xpose.msra.mxu0 0
        %867 = vmatprep.subr.bf16.mxu0 0
        %868 = vmatpush1.bf16.xpose.msra.mxu0 0
        %869 = vmatprep.subr.bf16.mxu0 0
        %870 = vmatpush1.bf16.xpose.msra.mxu0 0
        %871 = vmatprep.subr.bf16.mxu0 0
        %872 = vmatpush1.bf16.xpose.msra.mxu0 0
        %873 = vmatprep.subr.bf16.mxu0 0
        %874 = vmatpush1.bf16.xpose.msra.mxu0 0
        %875 = vmatprep.subr.bf16.mxu0 0
        %876 = vmatpush1.bf16.xpose.msra.mxu0 0
        %877 = vmatprep.mubr.bf16.mxu0 0
        %878 = vmatmul.mubr.bf16.gmra.mrb[0].mxu0 %v840
        %v879 = vpop.f32.mrb[0].mxu0
        %v880 = vadd.f32 0.0, %v879
        %v881 = vpop.f32.mrb[0].mxu0
        %v882 = vpop.f32.mrb[0].mxu0
        %v883 = vpop.f32.mrb[0].mxu0
        %884 = vdwg.mxu0
        %v885 = vsel %vm617, %v880, -inf
        %886 = vmax.xlane.f32.xlu0 %v885
        %v887 = vpop.xlane.xlu0 %886
        %v888 = vsub.f32 %v880, %v887
        %v889 = vmul.f32 %v888, 1.442695
        %v890 = vpow.pop %v889
        %v891 = vsel %vm617, %v890, 0.0
        %892 = vadd.xlane.f32.xlu0 %v891
        %v893 = vpop.xlane.xlu0 %892
        %v894 = vrcp.pop %v893
        %v895 = vmul.f32 %v890, %v894
        %v896 = vpack.c.bf16 %v895, %v895
        %897 = vrot.lane.b32.xlu0 %v613, 48
        %v898 = vpop.permute.xlu0 %897
        %v900 = vsel %vm617, %v896, 0
        %v903 = vsel %vm681, %v898, 0
        %905 = vmatprep.subr.bf16.mxu0 0
        %906 = vmatpush1.bf16.msra.mxu0 %v903
        %907 = vmatprep.subr.bf16.mxu0 0
        %908 = vmatpush1.bf16.msra.mxu0 0
        %909 = vmatprep.subr.bf16.mxu0 0
        %910 = vmatpush1.bf16.msra.mxu0 0
        %911 = vmatprep.subr.bf16.mxu0 0
        %912 = vmatpush1.bf16.msra.mxu0 0
        %913 = vmatprep.subr.bf16.mxu0 0
        %914 = vmatpush1.bf16.msra.mxu0 0
        %915 = vmatprep.subr.bf16.mxu0 0
        %916 = vmatpush1.bf16.msra.mxu0 0
        %917 = vmatprep.subr.bf16.mxu0 0
        %918 = vmatpush1.bf16.msra.mxu0 0
        %919 = vmatprep.subr.bf16.mxu0 0
        %920 = vmatpush1.bf16.msra.mxu0 0
        %921 = vmatprep.subr.bf16.mxu0 0
        %922 = vmatpush1.bf16.msra.mxu0 0
        %923 = vmatprep.subr.bf16.mxu0 0
        %924 = vmatpush1.bf16.msra.mxu0 0
        %925 = vmatprep.subr.bf16.mxu0 0
        %926 = vmatpush1.bf16.msra.mxu0 0
        %927 = vmatprep.subr.bf16.mxu0 0
        %928 = vmatpush1.bf16.msra.mxu0 0
        %929 = vmatprep.subr.bf16.mxu0 0
        %930 = vmatpush1.bf16.msra.mxu0 0
        %931 = vmatprep.subr.bf16.mxu0 0
        %932 = vmatpush1.bf16.msra.mxu0 0
        %933 = vmatprep.subr.bf16.mxu0 0
        %934 = vmatpush1.bf16.msra.mxu0 0
        %935 = vmatprep.subr.bf16.mxu0 0
        %936 = vmatpush1.bf16.msra.mxu0 0
        %937 = vmatprep.mubr.bf16.mxu0 0
        %938 = vmatmul.mubr.bf16.gmra.mrb[0].mxu0 %v900
        %v939 = vpop.f32.mrb[0].mxu0
        %v940 = vadd.f32 0.0, %v939
        %v941 = vpop.f32.mrb[0].mxu0
        %v942 = vpop.f32.mrb[0].mxu0
        %v943 = vpop.f32.mrb[0].mxu0
        %944 = vdwg.mxu0
        %945 = vrot.lane.b32.xlu0 %v613, 104
        %v946 = vpop.permute.xlu0 %945
        %947 = vrot.lane.b32.xlu0 %v613, 72
        %v948 = vpop.permute.xlu0 %947
        %v950 = vsel %vm617, %v946, 0
        %v953 = vsel %vm617, %v948, 0
        %955 = vmatprep.subr.bf16.mxu0 0
        %956 = vmatpush1.bf16.xpose.msra.mxu0 %v953
        %957 = vmatprep.subr.bf16.mxu0 0
        %958 = vmatpush1.bf16.xpose.msra.mxu0 0
        %959 = vmatprep.subr.bf16.mxu0 0
        %960 = vmatpush1.bf16.xpose.msra.mxu0 0
        %961 = vmatprep.subr.bf16.mxu0 0
        %962 = vmatpush1.bf16.xpose.msra.mxu0 0
        %963 = vmatprep.subr.bf16.mxu0 0
        %964 = vmatpush1.bf16.xpose.msra.mxu0 0
        %965 = vmatprep.subr.bf16.mxu0 0
        %966 = vmatpush1.bf16.xpose.msra.mxu0 0
        %967 = vmatprep.subr.bf16.mxu0 0
        %968 = vmatpush1.bf16.xpose.msra.mxu0 0
        %969 = vmatprep.subr.bf16.mxu0 0
        %970 = vmatpush1.bf16.xpose.msra.mxu0 0
        %971 = vmatprep.subr.bf16.mxu0 0
        %972 = vmatpush1.bf16.xpose.msra.mxu0 0
        %973 = vmatprep.subr.bf16.mxu0 0
        %974 = vmatpush1.bf16.xpose.msra.mxu0 0
        %975 = vmatprep.subr.bf16.mxu0 0
        %976 = vmatpush1.bf16.xpose.msra.mxu0 0
        %977 = vmatprep.subr.bf16.mxu0 0
        %978 = vmatpush1.bf16.xpose.msra.mxu0 0
        %979 = vmatprep.subr.bf16.mxu0 0
        %980 = vmatpush1.bf16.xpose.msra.mxu0 0
        %981 = vmatprep.subr.bf16.mxu0 0
        %982 = vmatpush1.bf16.xpose.msra.mxu0 0
        %983 = vmatprep.subr.bf16.mxu0 0
        %984 = vmatpush1.bf16.xpose.msra.mxu0 0
        %985 = vmatprep.subr.bf16.mxu0 0
        %986 = vmatpush1.bf16.xpose.msra.mxu0 0
        %987 = vmatprep.mubr.bf16.mxu0 0
        %988 = vmatmul.mubr.bf16.gmra.mrb[0].mxu0 %v950
        %v989 = vpop.f32.mrb[0].mxu0
        %v990 = vadd.f32 0.0, %v989
        %v991 = vpop.f32.mrb[0].mxu0
        %v992 = vpop.f32.mrb[0].mxu0
        %v993 = vpop.f32.mrb[0].mxu0
        %994 = vdwg.mxu0
        %v995 = vsel %vm617, %v990, -inf
        %996 = vmax.xlane.f32.xlu0 %v995
        %v997 = vpop.xlane.xlu0 %996
        %v998 = vsub.f32 %v990, %v997
        %v999 = vmul.f32 %v998, 1.442695
        %v1000 = vpow.pop %v999
        %v1001 = vsel %vm617, %v1000, 0.0
        %1002 = vadd.xlane.f32.xlu0 %v1001
        %v1003 = vpop.xlane.xlu0 %1002
        %v1004 = vrcp.pop %v1003
        %v1005 = vmul.f32 %v1000, %v1004
        %v1006 = vpack.c.bf16 %v1005, %v1005
        %1007 = vrot.lane.b32.xlu0 %v613, 40
        %v1008 = vpop.permute.xlu0 %1007
        %v1010 = vsel %vm617, %v1006, 0
        %v1013 = vsel %vm681, %v1008, 0
        %1015 = vmatprep.subr.bf16.mxu0 0
        %1016 = vmatpush1.bf16.msra.mxu0 %v1013
        %1017 = vmatprep.subr.bf16.mxu0 0
        %1018 = vmatpush1.bf16.msra.mxu0 0
        %1019 = vmatprep.subr.bf16.mxu0 0
        %1020 = vmatpush1.bf16.msra.mxu0 0
        %1021 = vmatprep.subr.bf16.mxu0 0
        %1022 = vmatpush1.bf16.msra.mxu0 0
        %1023 = vmatprep.subr.bf16.mxu0 0
        %1024 = vmatpush1.bf16.msra.mxu0 0
        %1025 = vmatprep.subr.bf16.mxu0 0
        %1026 = vmatpush1.bf16.msra.mxu0 0
        %1027 = vmatprep.subr.bf16.mxu0 0
        %1028 = vmatpush1.bf16.msra.mxu0 0
        %1029 = vmatprep.subr.bf16.mxu0 0
        %1030 = vmatpush1.bf16.msra.mxu0 0
        %1031 = vmatprep.subr.bf16.mxu0 0
        %1032 = vmatpush1.bf16.msra.mxu0 0
        %1033 = vmatprep.subr.bf16.mxu0 0
        %1034 = vmatpush1.bf16.msra.mxu0 0
        %1035 = vmatprep.subr.bf16.mxu0 0
        %1036 = vmatpush1.bf16.msra.mxu0 0
        %1037 = vmatprep.subr.bf16.mxu0 0
        %1038 = vmatpush1.bf16.msra.mxu0 0
        %1039 = vmatprep.subr.bf16.mxu0 0
        %1040 = vmatpush1.bf16.msra.mxu0 0
        %1041 = vmatprep.subr.bf16.mxu0 0
        %1042 = vmatpush1.bf16.msra.mxu0 0
        %1043 = vmatprep.subr.bf16.mxu0 0
        %1044 = vmatpush1.bf16.msra.mxu0 0
        %1045 = vmatprep.subr.bf16.mxu0 0
        %1046 = vmatpush1.bf16.msra.mxu0 0
        %1047 = vmatprep.mubr.bf16.mxu0 0
        %1048 = vmatmul.mubr.bf16.gmra.mrb[0].mxu0 %v1010
        %v1049 = vpop.f32.mrb[0].mxu0
        %v1050 = vadd.f32 0.0, %v1049
        %v1051 = vpop.f32.mrb[0].mxu0
        %v1052 = vpop.f32.mrb[0].mxu0
        %v1053 = vpop.f32.mrb[0].mxu0
        %1054 = vdwg.mxu0
        %1056 = vrot.lane.b32.xlu0 %v830, 8
        %v1057 = vpop.permute.xlu0 %1056
        %1060 = vrot.lane.b32.xlu0 %v940, 16
        %v1061 = vpop.permute.xlu0 %1060
        %1064 = vrot.lane.b32.xlu0 %v1050, 24
        %v1065 = vpop.permute.xlu0 %1064
        %v1067 = vsel %vm617, %v720, %v1057
        %vm1068 = vcmask 130048
        %v1069 = vsel %vm1068, %v1067, %v1061
        %vm1070 = vcmask 195584
        %v1071 = vsel %vm1070, %v1069, %v1065
        %v1072 = vpack.c.bf16 %v1071, %v1071
        %v1073 = vld [vmem:[%s515] sm:$0xf]
        %v1074 = vld [vmem:[%s515 + $0x4] sm:$0xf]
        %v1075 = vld [vmem:[%s515 + $0x8] sm:$0xf]
        %v1076 = vld [vmem:[%s515 + $0xc] sm:$0xf]
        %v1077 = vld [vmem:[%s518] sm:$0x1]
        %v1079 = vlaneseq
        %v1080 = vshrl.u32 %v1079, 7
        %v1081 = vsub.s32 0, %v1080
        %v1082 = vrot.slane %v1077, %v1081
        %v1088 = vunpack.c.l.b16 %v1073
        %v1089 = vunpack.c.l.b16 %v1074
        %v1090 = vunpack.c.l.b16 %v1075
        %v1091 = vunpack.c.l.b16 %v1076
        %v1092 = vpack.c.b16 %v1089, %v1088
        %v1093 = vpack.c.b16 %v1091, %v1090
        %v1097 = vsel %vm569, %v1072, 0
        %1099 = vmatprep.subr.bf16.mxu0 0
        %1100 = vmatpush1.bf16.msra.mxu0 %v1092
        %1101 = vmatprep.subr.bf16.mxu0 0
        %1102 = vmatpush1.bf16.msra.mxu0 %v1093
        %1103 = vmatprep.subr.bf16.mxu0 0
        %1104 = vmatpush1.bf16.msra.mxu0 0
        %1105 = vmatprep.subr.bf16.mxu0 0
        %1106 = vmatpush1.bf16.msra.mxu0 0
        %1107 = vmatprep.subr.bf16.mxu0 0
        %1108 = vmatpush1.bf16.msra.mxu0 0
        %1109 = vmatprep.subr.bf16.mxu0 0
        %1110 = vmatpush1.bf16.msra.mxu0 0
        %1111 = vmatprep.subr.bf16.mxu0 0
        %1112 = vmatpush1.bf16.msra.mxu0 0
        %1113 = vmatprep.subr.bf16.mxu0 0
        %1114 = vmatpush1.bf16.msra.mxu0 0
        %1115 = vmatprep.subr.bf16.mxu0 0
        %1116 = vmatpush1.bf16.msra.mxu0 0
        %1117 = vmatprep.subr.bf16.mxu0 0
        %1118 = vmatpush1.bf16.msra.mxu0 0
        %1119 = vmatprep.subr.bf16.mxu0 0
        %1120 = vmatpush1.bf16.msra.mxu0 0
        %1121 = vmatprep.subr.bf16.mxu0 0
        %1122 = vmatpush1.bf16.msra.mxu0 0
        %1123 = vmatprep.subr.bf16.mxu0 0
        %1124 = vmatpush1.bf16.msra.mxu0 0
        %1125 = vmatprep.subr.bf16.mxu0 0
        %1126 = vmatpush1.bf16.msra.mxu0 0
        %1127 = vmatprep.subr.bf16.mxu0 0
        %1128 = vmatpush1.bf16.msra.mxu0 0
        %1129 = vmatprep.subr.bf16.mxu0 0
        %1130 = vmatpush1.bf16.msra.mxu0 0
        %1131 = vmatprep.mubr.bf16.mxu0 0
        %1132 = vmatmul.mubr.bf16.gmra.mrb[0].mxu0 %v1097
        %v1133 = vpop.f32.mrb[0].mxu0
        %v1134 = vadd.f32 %v1082, %v1133
        %v1135 = vpop.f32.mrb[0].mxu0
        %v1136 = vpop.f32.mrb[0].mxu0
        %v1137 = vpop.f32.mrb[0].mxu0
        %1138 = vdwg.mxu0
        %v1139 = vld [vmem:[%s522] sm:$0x3]
        %v1140 = vadd.f32 %v551, %v1134
        %v1141 = vsel %vm569, %v1140, 0.0
        %1142 = vadd.xlane.f32.xlu0 %v1141
        %v1143 = vpop.xlane.xlu0 %1142
        %v1144 = vrcp.pop 32.0
        %v1145 = vmul.f32 %v1143, %v1144
        %v1146 = vsub.f32 %v1140, %v1145
        %v1147 = vmul.f32 %v1146, %v1146
        %v1148 = vsel %vm569, %v1147, 0.0
        %1149 = vadd.xlane.f32.xlu0 %v1148
        %v1150 = vpop.xlane.xlu0 %1149
        %v1151 = vmul.f32 %v1150, %v1144
        %v1152 = vadd.f32 %v1151, 1e-05
        %v1153 = vrsqrt.pop %v1152
        %v1154 = vmul.f32 %v1146, %v1153
        %v1155 = vlaneseq
        %v1156 = vshrl.u32 %v1155, 7
        %v1157 = vsub.s32 0, %v1156
        %v1158 = vrot.slane %v1139, %v1157
        %v1159 = vmul.f32 %v1154, %v1158
        %v1160 = vlaneseq
        %v1161 = vshrl.u32 %v1160, 7
        %v1162 = vsub.s32 1, %v1161
        %v1163 = vrot.slane %v1139, %v1162
        %v1164 = vadd.f32 %v1159, %v1163
        %v1165 = vpack.c.bf16 %v1164, %v1164
        %v1166 = vld [vmem:[%s527] sm:$0xf]
        %v1167 = vld [vmem:[%s527 + $0x4] sm:$0xf]
        %v1168 = vld [vmem:[%s527 + $0x8] sm:$0xf]
        %v1169 = vld [vmem:[%s527 + $0xc] sm:$0xf]
        %v1170 = vld [vmem:[%s530] sm:$0x1]
        %v1172 = vlaneseq
        %v1173 = vshrl.u32 %v1172, 7
        %v1174 = vsub.s32 0, %v1173
        %v1175 = vrot.slane %v1170, %v1174
        %v1181 = vunpack.c.l.b16 %v1166
        %v1182 = vunpack.c.l.b16 %v1167
        %v1183 = vunpack.c.l.b16 %v1168
        %v1184 = vunpack.c.l.b16 %v1169
        %v1185 = vpack.c.b16 %v1182, %v1181
        %v1186 = vpack.c.b16 %v1184, %v1183
        %v1190 = vsel %vm569, %v1165, 0
        %1192 = vmatprep.subr.bf16.mxu0 0
        %1193 = vmatpush1.bf16.msra.mxu0 %v1185
        %1194 = vmatprep.subr.bf16.mxu0 0
        %1195 = vmatpush1.bf16.msra.mxu0 %v1186
        %1196 = vmatprep.subr.bf16.mxu0 0
        %1197 = vmatpush1.bf16.msra.mxu0 0
        %1198 = vmatprep.subr.bf16.mxu0 0
        %1199 = vmatpush1.bf16.msra.mxu0 0
        %1200 = vmatprep.subr.bf16.mxu0 0
        %1201 = vmatpush1.bf16.msra.mxu0 0
        %1202 = vmatprep.subr.bf16.mxu0 0
        %1203 = vmatpush1.bf16.msra.mxu0 0
        %1204 = vmatprep.subr.bf16.mxu0 0
        %1205 = vmatpush1.bf16.msra.mxu0 0
        %1206 = vmatprep.subr.bf16.mxu0 0
        %1207 = vmatpush1.bf16.msra.mxu0 0
        %1208 = vmatprep.subr.bf16.mxu0 0
        %1209 = vmatpush1.bf16.msra.mxu0 0
        %1210 = vmatprep.subr.bf16.mxu0 0
        %1211 = vmatpush1.bf16.msra.mxu0 0
        %1212 = vmatprep.subr.bf16.mxu0 0
        %1213 = vmatpush1.bf16.msra.mxu0 0
        %1214 = vmatprep.subr.bf16.mxu0 0
        %1215 = vmatpush1.bf16.msra.mxu0 0
        %1216 = vmatprep.subr.bf16.mxu0 0
        %1217 = vmatpush1.bf16.msra.mxu0 0
        %1218 = vmatprep.subr.bf16.mxu0 0
        %1219 = vmatpush1.bf16.msra.mxu0 0
        %1220 = vmatprep.subr.bf16.mxu0 0
        %1221 = vmatpush1.bf16.msra.mxu0 0
        %1222 = vmatprep.subr.bf16.mxu0 0
        %1223 = vmatpush1.bf16.msra.mxu0 0
        %1224 = vmatprep.mubr.bf16.mxu0 0
        %1225 = vmatmul.mubr.bf16.gmra.mrb[0].mxu0 %v1190
        %v1226 = vpop.f32.mrb[0].mxu0
        %v1227 = vadd.f32 %v1175, %v1226
        %v1228 = vpop.f32.mrb[0].mxu0
        %v1229 = vpop.f32.mrb[0].mxu0
        %v1230 = vpop.f32.mrb[0].mxu0
        %1231 = vdwg.mxu0
        %v1232 = vmax.f32 %v1227, 0.0
        %v1233 = vpack.c.bf16 %v1232, %v1232
        %v1234 = vld [vmem:[%s535] sm:$0xf]
        %v1235 = vld [vmem:[%s535 + $0x4] sm:$0xf]
        %v1236 = vld [vmem:[%s535 + $0x8] sm:$0xf]
        %v1237 = vld [vmem:[%s535 + $0xc] sm:$0xf]
        %v1238 = vld [vmem:[%s535 + $0x10] sm:$0xf]
        %v1239 = vld [vmem:[%s535 + $0x14] sm:$0xf]
        %v1240 = vld [vmem:[%s535 + $0x18] sm:$0xf]
        %v1241 = vld [vmem:[%s535 + $0x1c] sm:$0xf]
        %v1242 = vld [vmem:[%s538] sm:$0x1]
        %v1244 = vlaneseq
        %v1245 = vshrl.u32 %v1244, 7
        %v1246 = vsub.s32 0, %v1245
        %v1247 = vrot.slane %v1242, %v1246
        %v1257 = vunpack.c.l.b16 %v1234
        %v1258 = vunpack.c.l.b16 %v1235
        %v1259 = vunpack.c.l.b16 %v1236
        %v1260 = vunpack.c.l.b16 %v1237
        %v1261 = vunpack.c.l.b16 %v1238
        %v1262 = vunpack.c.l.b16 %v1239
        %v1263 = vunpack.c.l.b16 %v1240
        %v1264 = vunpack.c.l.b16 %v1241
        %v1265 = vpack.c.b16 %v1258, %v1257
        %v1266 = vpack.c.b16 %v1260, %v1259
        %v1267 = vpack.c.b16 %v1262, %v1261
        %v1268 = vpack.c.b16 %v1264, %v1263
        %vm1273 = vcmask 523264
        %v1275 = vsel %vm1273, %v1233, 0
        %1277 = vmatprep.subr.bf16.mxu0 0
        %1278 = vmatpush1.bf16.msra.mxu0 %v1265
        %1279 = vmatprep.subr.bf16.mxu0 0
        %1280 = vmatpush1.bf16.msra.mxu0 %v1266
        %1281 = vmatprep.subr.bf16.mxu0 0
        %1282 = vmatpush1.bf16.msra.mxu0 %v1267
        %1283 = vmatprep.subr.bf16.mxu0 0
        %1284 = vmatpush1.bf16.msra.mxu0 %v1268
        %1285 = vmatprep.subr.bf16.mxu0 0
        %1286 = vmatpush1.bf16.msra.mxu0 0
        %1287 = vmatprep.subr.bf16.mxu0 0
        %1288 = vmatpush1.bf16.msra.mxu0 0
        %1289 = vmatprep.subr.bf16.mxu0 0
        %1290 = vmatpush1.bf16.msra.mxu0 0
        %1291 = vmatprep.subr.bf16.mxu0 0
        %1292 = vmatpush1.bf16.msra.mxu0 0
        %1293 = vmatprep.subr.bf16.mxu0 0
        %1294 = vmatpush1.bf16.msra.mxu0 0
        %1295 = vmatprep.subr.bf16.mxu0 0
        %1296 = vmatpush1.bf16.msra.mxu0 0
        %1297 = vmatprep.subr.bf16.mxu0 0
        %1298 = vmatpush1.bf16.msra.mxu0 0
        %1299 = vmatprep.subr.bf16.mxu0 0
        %1300 = vmatpush1.bf16.msra.mxu0 0
        %1301 = vmatprep.subr.bf16.mxu0 0
        %1302 = vmatpush1.bf16.msra.mxu0 0
        %1303 = vmatprep.subr.bf16.mxu0 0
        %1304 = vmatpush1.bf16.msra.mxu0 0
        %1305 = vmatprep.subr.bf16.mxu0 0
        %1306 = vmatpush1.bf16.msra.mxu0 0
        %1307 = vmatprep.subr.bf16.mxu0 0
        %1308 = vmatpush1.bf16.msra.mxu0 0
        %1309 = vmatprep.mubr.bf16.mxu0 0
        %1310 = vmatmul.mubr.bf16.gmra.mrb[0].mxu0 %v1275
        %v1311 = vpop.f32.mrb[0].mxu0
        %v1312 = vadd.f32 %v1247, %v1311
        %v1313 = vpop.f32.mrb[0].mxu0
        %v1314 = vpop.f32.mrb[0].mxu0
        %v1315 = vpop.f32.mrb[0].mxu0
        %1316 = vdwg.mxu0
        %v1317 = vld [vmem:[%s542] sm:$0x3]
        %v1318 = vadd.f32 %v1164, %v1312
        %v1319 = vsel %vm569, %v1318, 0.0
        %1320 = vadd.xlane.f32.xlu0 %v1319
        %v1321 = vpop.xlane.xlu0 %1320
        %v1322 = vmul.f32 %v1321, %v1144
        %v1323 = vsub.f32 %v1318, %v1322
        %v1324 = vmul.f32 %v1323, %v1323
        %v1325 = vsel %vm569, %v1324, 0.0
        %1326 = vadd.xlane.f32.xlu0 %v1325
        %v1327 = vpop.xlane.xlu0 %1326
        %v1328 = vmul.f32 %v1327, %v1144
        %v1329 = vadd.f32 %v1328, 1e-05
        %v1330 = vrsqrt.pop %v1329
        %v1331 = vmul.f32 %v1323, %v1330
        %v1332 = vlaneseq
        %v1333 = vshrl.u32 %v1332, 7
        %v1334 = vsub.s32 0, %v1333
        %v1335 = vrot.slane %v1317, %v1334
        %v1336 = vmul.f32 %v1331, %v1335
        %v1337 = vlaneseq
        %v1338 = vshrl.u32 %v1337, 7
        %v1339 = vsub.s32 1, %v1338
        %v1340 = vrot.slane %v1317, %v1339
        %v1341 = vadd.f32 %v1336, %v1340
        %1342 = vst.msk [vmem:[%s505] sm:$0xff] %vm569, %v1341
        %s1343 = sand.u32 %s307, 1
        %s1344 = scalar_lea.sflag [#allocation4], %s1343
        %s1345 = sand.u32 %s307, 1
        %s1346 = smul.addr %s1345, 8
        %s1347 = scalar_lea.vmem [#allocation5], %s1346
        // Predicated region
        $region69: #{tpu_custom_call.1} parent=59 // pred_check
          %p1348 = pneg %p317
        $region70: #{tpu_custom_call.1} parent=59 // pred_check_branch
          %1350 = sbr.rel (%p1348) target = $region72
        $region71: #{tpu_custom_call.1} parent=59 // pred_region
          %s1352 = ssub.s32 128, 128
          %1353 = vsyncadd %s1344, %s1352
          %s1354 = smul.addr %s31, 128
          %s1355 = scalar_lea.hbm %s10, %s1354
          %s1357 = sshll.u32 %s1347, 4
          %s1358 = int_to_ptr.vmem [resolvable:$true] %s1357
          %1360 = dma.vmem_to_hbm [thread:$0]  %s1358, 128, %s1355, %s1344
        $region72: #{tpu_custom_call.1} parent=59 // pred_fallthru
          _
      $region60: #{tpu_custom_call.1} parent=5 // pred_fallthru
        _
      %p1361 = scmp.le.s32.totalorder 2, %s22
      // Predicated region
      $region73: #{tpu_custom_call.1} parent=5 // pred_check
        %p1362 = pneg %p1361
      $region74: #{tpu_custom_call.1} parent=5 // pred_check_branch
        %1364 = sbr.rel (%p1362) target = $region76
      $region75: #{tpu_custom_call.1} parent=5 // pred_region
        %s1365 = ssub.s32 %s22, 2
        // Predicated region
        $region77: #{tpu_custom_call.1} parent=75 // pred_check
          %p1366 = pneg %p323
        $region78: #{tpu_custom_call.1} parent=75 // pred_check_branch
          %1368 = sbr.rel (%p1366) target = $region80
        $region79: #{tpu_custom_call.1} parent=75 // pred_region
          %s1369 = sand.u32 %s308, 1
          %s1370 = scalar_lea.sflag [#allocation4], %s1369
          %s1371 = sand.u32 %s308, 1
          %s1372 = smul.addr %s1371, 8
          %s1373 = scalar_lea.vmem [#allocation5], %s1372
          %1374 = dma.done %s1370, 128
        $region80: #{tpu_custom_call.1} parent=75 // pred_fallthru
          _
      $region76: #{tpu_custom_call.1} parent=5 // pred_fallthru
        _
    $region6: #{tpu_custom_call.1} parent=1 // loop_footer
      %s26 = sadd.s32 1, %s22
    $region7: #{tpu_custom_call.1} parent=1 // loop_footer_branch
      %21 = sbr.rel target = $region3
    $region8: #{tpu_custom_call.1} parent=1 // loop_exit
      _
    %1375 = vsyncpa [#allocation3], 1
    %s1376 = scalar_lea.sflag [#allocation3], 1
    %1377 = vsyncpa %s1376, 1
    %1378 = vsyncpa [#allocation4], 1
    %s1379 = scalar_lea.sflag [#allocation4], 1
    %1380 = vsyncpa %s1379, 1

</llo_original>
